<compile_context>
chip_gen: v6e
topology: v6e:2x2x1
jax: 0.10.0
libtpu: 0.0.40
codegen_flags: <defaults>
</compile_context>

<pallas_src>
import functools

import jax
import jax.numpy as jnp
from jax.experimental import pallas as pl
from jax.experimental.pallas import tpu as pltpu


_NEG_INF = -1e30        # finite "minus infinity" so exp() never produces NaN
_LANE = 128             # lane width / channel padding


def _gat_kernel(adj_ref, adst_ref, asrc_ref, xh_ref, b_ref, o_ref,
                m_sc, l_sc, acc_sc, *, num_heads, negative_slope):
    k = pl.program_id(1)
    nk = pl.num_programs(1)

    @pl.when(k == 0)
    def _():
        m_sc[...] = jnp.full_like(m_sc, _NEG_INF)
        l_sc[...] = jnp.zeros_like(l_sc)
        acc_sc[...] = jnp.zeros_like(acc_sc)

    mask = adj_ref[...] > 0.0                                # (TM, TK) bool
    ad_all = adst_ref[...].astype(jnp.float32)               # (TM, H)
    as_all = asrc_ref[...].astype(jnp.float32)               # (H, TK)

    for h in range(num_heads):                               # H is small & static
        a_dst = ad_all[:, h:h + 1]                           # (TM, 1)
        a_src = as_all[h:h + 1, :]                           # (1, TK)
        s = a_dst + a_src                                    # (TM, TK)
        s = jnp.where(s > 0, s, negative_slope * s)          # LeakyReLU(0.2)
        s = jnp.where(mask, s, _NEG_INF)                     # mask non-edges

        m_prev = m_sc[h]                                     # (TM, 1)
        m_new = jnp.maximum(m_prev, jnp.max(s, axis=-1, keepdims=True))
        corr = jnp.exp(m_prev - m_new)                       # (TM, 1)
        p = jnp.exp(s - m_new)                               # (TM, TK)

        l_sc[h] = corr * l_sc[h] + jnp.sum(p, axis=-1, keepdims=True)
        acc_sc[h] = corr * acc_sc[h] + jnp.dot(
            p.astype(xh_ref.dtype), xh_ref[h],
            preferred_element_type=jnp.float32)
        m_sc[h] = m_new

    @pl.when(k == nk - 1)
    def _():
        total = acc_sc[0] * pl.reciprocal(l_sc[0], approx=True)
        for h in range(1, num_heads):
            total = total + acc_sc[h] * pl.reciprocal(l_sc[h], approx=True)
        total = total * (1.0 / num_heads) + b_ref[...]       # head mean + bias
        o_ref[...] = jnp.maximum(total, 0.0).astype(o_ref.dtype)   # ReLU


def _round_up(x, m):
    return (x + m - 1) // m * m


def _choose_tiles(n):
    if n <= 128:
        return 128, 128
    if n <= 512:
        return 128, 512
    return 512, 1024


def gat_conv_relu(x, edge_index, lin_weight, att_src, att_dst, bias,
                  negative_slope=0.2):
    """PyG-style GATConv (heads averaged, bias) followed by ReLU.

    x:          [N, C_in]  float32
    edge_index: [2, E]     int32   (row 0 = source, row 1 = target)
    lin_weight: [H*C_out, C_in]
    att_src:    [H, C_out]
    att_dst:    [H, C_out]
    bias:       [C_out]
    """
    n, _ = x.shape
    heads, c_out = att_src.shape

    # --- plain-XLA glue: feature transform & per-node attention logits (tiny) ----
    xw = jnp.dot(x.astype(jnp.float32), lin_weight.T.astype(jnp.float32))
    xh = xw.reshape(n, heads, c_out)                          # [N, H, C]
    alpha_src = jnp.einsum('nhc,hc->nh', xh, att_src.astype(jnp.float32))
    alpha_dst = jnp.einsum('nhc,hc->nh', xh, att_dst.astype(jnp.float32))

    # --- dense edge mask with self loops: M[target, source] ----------------------
    tm, tk = _choose_tiles(n)
    n_pad = _round_up(n, max(tm, tk))
    c_pad = _LANE

    src, dst = edge_index[0], edge_index[1]
    mask = jnp.zeros((n_pad, n_pad), jnp.float32)
    mask = mask.at[dst, src].set(1.0)
    diag = jnp.arange(n)
    mask = mask.at[diag, diag].set(1.0)                       # self loops
    adj = mask.astype(jnp.bfloat16)                           # bf16: halve HBM bytes

    adst = jnp.zeros((n_pad, heads), jnp.float32).at[:n].set(alpha_dst)
    asrc = jnp.zeros((heads, n_pad), jnp.float32).at[:, :n].set(alpha_src.T)
    xh_p = jnp.zeros((heads, n_pad, c_pad), jnp.bfloat16)
    xh_p = xh_p.at[:, :n, :c_out].set(
        jnp.transpose(xh, (1, 0, 2)).astype(jnp.bfloat16))
    b_p = jnp.zeros((1, c_pad), jnp.float32).at[0, :c_out].set(
        bias.astype(jnp.float32))

    grid = (n_pad // tm, n_pad // tk)
    kernel = functools.partial(_gat_kernel, num_heads=heads,
                               negative_slope=negative_slope)

    out = pl.pallas_call(
        kernel,
        out_shape=jax.ShapeDtypeStruct((n_pad, c_pad), jnp.float32),
        grid_spec=pltpu.PrefetchScalarGridSpec(
            num_scalar_prefetch=0,
            grid=grid,
            in_specs=[
                pl.BlockSpec((tm, tk), lambda i, k: (i, k)),            # edge mask
                pl.BlockSpec((tm, heads), lambda i, k: (i, 0)),         # alpha_dst
                pl.BlockSpec((heads, tk), lambda i, k: (0, k)),         # alpha_src
                pl.BlockSpec((heads, tk, c_pad), lambda i, k: (0, k, 0)),  # XW
                pl.BlockSpec((1, c_pad), lambda i, k: (0, 0)),          # bias
            ],
            out_specs=pl.BlockSpec((tm, c_pad), lambda i, k: (i, 0)),
            scratch_shapes=[
                pltpu.VMEM((heads, tm, 1), jnp.float32),     # running max
                pltpu.VMEM((heads, tm, 1), jnp.float32),     # running denom
                pltpu.VMEM((heads, tm, c_pad), jnp.float32), # accumulator
            ]),
        compiler_params=pltpu.CompilerParams(
            dimension_semantics=("parallel", "arbitrary")),
    )(adj, adst, asrc, xh_p, b_p)

    return out[:n, :c_out]


if __name__ == "__main__":
    key = jax.random.PRNGKey(0)
    k_x, k_e, k_w, k_as, k_ad, k_b = jax.random.split(key, 6)

    num_nodes, in_channels, out_channels, heads, num_edges = 16, 4, 8, 2, 32

    x = jax.random.normal(k_x, (num_nodes, in_channels), dtype=jnp.float32)
    edge_index = jax.random.randint(
        k_e, (2, num_edges), 0, num_nodes, dtype=jnp.int32)

    scale = 1.0 / jnp.sqrt(in_channels)
    lin_weight = jax.random.normal(
        k_w, (heads * out_channels, in_channels), dtype=jnp.float32) * scale
    att_src = jax.random.normal(k_as, (heads, out_channels), jnp.float32) * 0.1
    att_dst = jax.random.normal(k_ad, (heads, out_channels), jnp.float32) * 0.1
    bias = jax.random.normal(k_b, (out_channels,), jnp.float32) * 0.01

    out = gat_conv_relu(x, edge_index, lin_weight, att_src, att_dst, bias)
    jax.block_until_ready(out)
    assert out.shape == (num_nodes, out_channels)
    assert bool(jnp.all(jnp.isfinite(out)))
    print("KERNEL_OK")
</pallas_src>

<mosaic_0001>
module attributes {stable_mosaic.version = 11 : i64} {
  func.func @_gat_kernel(%arg0: i32, %arg1: i32, %arg2: memref<128x128xbf16, #tpu.memory_space<vmem>>, %arg3: memref<128x2xf32, #tpu.memory_space<vmem>>, %arg4: memref<2x128xf32, #tpu.memory_space<vmem>>, %arg5: memref<2x128x128xbf16, #tpu.memory_space<vmem>>, %arg6: memref<1x128xf32, #tpu.memory_space<vmem>>, %arg7: memref<128x128xf32, #tpu.memory_space<vmem>>, %arg8: memref<2x128x1xf32, #tpu.memory_space<vmem>>, %arg9: memref<2x128x1xf32, #tpu.memory_space<vmem>>, %arg10: memref<2x128x128xf32, #tpu.memory_space<vmem>>) attributes {dimension_semantics = [#tpu.dimension_semantics<parallel>, #tpu.dimension_semantics<arbitrary>], iteration_bounds = array<i64: 1, 1>, scalar_prefetch = 0 : i64, scratch_operands = 3 : i64, tpu.core_type = #tpu.core_type<tc>, window_params = [{transform_indices = @transform_0, window_bounds = array<i64: 128, 128>}, {transform_indices = @transform_1, window_bounds = array<i64: 128, 2>}, {transform_indices = @transform_2, window_bounds = array<i64: 2, 128>}, {transform_indices = @transform_3, window_bounds = array<i64: 2, 128, 128>}, {pipeline_mode = #tpu.pipeline_mode<synchronous>, transform_indices = @transform_4, window_bounds = array<i64: 1, 128>}, {transform_indices = @transform_5, window_bounds = array<i64: 128, 128>}]} {
    %c0_i32 = arith.constant 0 : i32
    %0 = arith.cmpi eq, %arg1, %c0_i32 : i32
    %1 = arith.extui %0 : i1 to i32
    %c0_i32_0 = arith.constant 0 : i32
    %2 = arith.cmpi ne, %1, %c0_i32_0 : i32
    scf.if %2 {
      %cst_61 = arith.constant -1.000000e+30 : f32
      %103 = vector.broadcast %cst_61 : f32 to vector<2x128x1xf32>
      %c0_62 = arith.constant 0 : index
      %c0_63 = arith.constant 0 : index
      %c0_64 = arith.constant 0 : index
      %104 = vector.load %arg8[%c0_62, %c0_63, %c0_64] : memref<2x128x1xf32, #tpu.memory_space<vmem>>, vector<2x128x1xf32>
      tpu.vector_store %arg8[%c0_62, %c0_63, %c0_64], %103 {strides = array<i32>} : memref<2x128x1xf32, #tpu.memory_space<vmem>>, vector<2x128x1xf32>,
      %cst_65 = arith.constant 0.000000e+00 : f32
      %105 = vector.broadcast %cst_65 : f32 to vector<2x128x1xf32>
      %c0_66 = arith.constant 0 : index
      %c0_67 = arith.constant 0 : index
      %c0_68 = arith.constant 0 : index
      %106 = vector.load %arg9[%c0_66, %c0_67, %c0_68] : memref<2x128x1xf32, #tpu.memory_space<vmem>>, vector<2x128x1xf32>
      tpu.vector_store %arg9[%c0_66, %c0_67, %c0_68], %105 {strides = array<i32>} : memref<2x128x1xf32, #tpu.memory_space<vmem>>, vector<2x128x1xf32>,
      %cst_69 = arith.constant 0.000000e+00 : f32
      %107 = vector.broadcast %cst_69 : f32 to vector<2x128x128xf32>
      %c0_70 = arith.constant 0 : index
      %c0_71 = arith.constant 0 : index
      %c0_72 = arith.constant 0 : index
      %108 = vector.load %arg10[%c0_70, %c0_71, %c0_72] : memref<2x128x128xf32, #tpu.memory_space<vmem>>, vector<2x128x128xf32>
      tpu.vector_store %arg10[%c0_70, %c0_71, %c0_72], %107 {strides = array<i32>} : memref<2x128x128xf32, #tpu.memory_space<vmem>>, vector<2x128x128xf32>,
    } else {
    }
    %c0 = arith.constant 0 : index
    %c0_1 = arith.constant 0 : index
    %3 = vector.load %arg2[%c0, %c0_1] : memref<128x128xbf16, #tpu.memory_space<vmem>>, vector<128x128xbf16>
    %cst = arith.constant 0.000000e+00 : bf16
    %4 = vector.broadcast %cst : bf16 to vector<128x128xbf16>
    %5 = arith.cmpf ogt, %3, %4 : vector<128x128xbf16>
    %c0_2 = arith.constant 0 : index
    %c0_3 = arith.constant 0 : index
    %6 = vector.load %arg3[%c0_2, %c0_3] : memref<128x2xf32, #tpu.memory_space<vmem>>, vector<128x2xf32>
    %c0_4 = arith.constant 0 : index
    %c0_5 = arith.constant 0 : index
    %7 = vector.load %arg4[%c0_4, %c0_5] : memref<2x128xf32, #tpu.memory_space<vmem>>, vector<2x128xf32>
    %8 = vector.extract_strided_slice %6 {offsets = [0, 0], sizes = [128, 1], strides = [1, 1]} : vector<128x2xf32> to vector<128x1xf32>
    %9 = vector.extract_strided_slice %7 {offsets = [0, 0], sizes = [1, 128], strides = [1, 1]} : vector<2x128xf32> to vector<1x128xf32>
    %10 = vector.broadcast %8 : vector<128x1xf32> to vector<128x128xf32>
    %11 = vector.broadcast %9 : vector<1x128xf32> to vector<128x128xf32>
    %12 = arith.addf %10, %11 : vector<128x128xf32>
    %cst_6 = arith.constant 0.000000e+00 : f32
    %13 = vector.broadcast %cst_6 : f32 to vector<128x128xf32>
    %14 = arith.cmpf ogt, %12, %13 : vector<128x128xf32>
    %cst_7 = arith.constant 2.000000e-01 : f32
    %15 = vector.broadcast %cst_7 : f32 to vector<128x128xf32>
    %16 = arith.mulf %15, %12 : vector<128x128xf32>
    %17 = arith.select %14, %12, %16 : vector<128x128xi1>, vector<128x128xf32>
    %cst_8 = arith.constant -1.000000e+30 : f32
    %18 = vector.broadcast %cst_8 : f32 to vector<128x128xf32>
    %19 = arith.select %5, %17, %18 : vector<128x128xi1>, vector<128x128xf32>
    %c0_9 = arith.constant 0 : index
    %c0_10 = arith.constant 0 : index
    %c0_11 = arith.constant 0 : index
    %20 = vector.load %arg8[%c0_9, %c0_10, %c0_11] : memref<2x128x1xf32, #tpu.memory_space<vmem>>, vector<1x128x1xf32>
    %21 = vector.shape_cast %20 : vector<1x128x1xf32> to vector<128x1xf32>
    %cst_12 = arith.constant dense<0xFF800000> : vector<128xf32>
    %22 = vector.multi_reduction <maximumf>, %19, %cst_12 [1] : vector<128x128xf32> to vector<128xf32>
    %23 = vector.shape_cast %22 : vector<128xf32> to vector<128x1xf32>
    %24 = arith.maximumf %21, %23 : vector<128x1xf32>
    %25 = arith.subf %21, %24 : vector<128x1xf32>
    %26 = math.exp %25 : vector<128x1xf32>
    %27 = vector.broadcast %24 : vector<128x1xf32> to vector<128x128xf32>
    %28 = arith.subf %19, %27 : vector<128x128xf32>
    %29 = math.exp %28 : vector<128x128xf32>
    %c0_13 = arith.constant 0 : index
    %c0_14 = arith.constant 0 : index
    %c0_15 = arith.constant 0 : index
    %30 = vector.load %arg9[%c0_13, %c0_14, %c0_15] : memref<2x128x1xf32, #tpu.memory_space<vmem>>, vector<1x128x1xf32>
    %31 = vector.shape_cast %30 : vector<1x128x1xf32> to vector<128x1xf32>
    %32 = arith.mulf %26, %31 : vector<128x1xf32>
    %cst_16 = arith.constant dense<0.000000e+00> : vector<128xf32>
    %33 = vector.multi_reduction <add>, %29, %cst_16 [1] : vector<128x128xf32> to vector<128xf32>
    %34 = vector.shape_cast %33 : vector<128xf32> to vector<128x1xf32>
    %35 = arith.addf %32, %34 : vector<128x1xf32>
    %c0_17 = arith.constant 0 : index
    %c0_18 = arith.constant 0 : index
    %c0_19 = arith.constant 0 : index
    %36 = vector.load %arg9[%c0_17, %c0_18, %c0_19] : memref<2x128x1xf32, #tpu.memory_space<vmem>>, vector<1x128x1xf32>
    %37 = vector.shape_cast %36 : vector<1x128x1xf32> to vector<128x1xf32>
    %38 = vector.shape_cast %35 : vector<128x1xf32> to vector<1x128x1xf32>
    tpu.vector_store %arg9[%c0_17, %c0_18, %c0_19], %38 {strides = array<i32>} : memref<2x128x1xf32, #tpu.memory_space<vmem>>, vector<1x128x1xf32>,
    %c0_20 = arith.constant 0 : index
    %c0_21 = arith.constant 0 : index
    %c0_22 = arith.constant 0 : index
    %39 = vector.load %arg10[%c0_20, %c0_21, %c0_22] : memref<2x128x128xf32, #tpu.memory_space<vmem>>, vector<1x128x128xf32>
    %40 = vector.shape_cast %39 : vector<1x128x128xf32> to vector<128x128xf32>
    %41 = vector.broadcast %26 : vector<128x1xf32> to vector<128x128xf32>
    %42 = arith.mulf %41, %40 : vector<128x128xf32>
    %43 = arith.truncf %29 : vector<128x128xf32> to vector<128x128xbf16>
    %c0_23 = arith.constant 0 : index
    %c0_24 = arith.constant 0 : index
    %c0_25 = arith.constant 0 : index
    %44 = vector.load %arg5[%c0_23, %c0_24, %c0_25] : memref<2x128x128xbf16, #tpu.memory_space<vmem>>, vector<1x128x128xbf16>
    %45 = vector.shape_cast %44 : vector<1x128x128xbf16> to vector<128x128xbf16>
    %cst_26 = arith.constant dense<0.000000e+00> : vector<128x128xf32>
    %46 = tpu.matmul %43, %45, %cst_26 {dimension_numbers = #tpu.dot_dimension_numbers<[1], [0], [0], [1], [0, 0, 1, 1], [], []>} : vector<128x128xbf16>, vector<128x128xbf16>, vector<128x128xf32> -> vector<128x128xf32>
    %47 = arith.addf %42, %46 : vector<128x128xf32>
    %c0_27 = arith.constant 0 : index
    %c0_28 = arith.constant 0 : index
    %c0_29 = arith.constant 0 : index
    %48 = vector.load %arg10[%c0_27, %c0_28, %c0_29] : memref<2x128x128xf32, #tpu.memory_space<vmem>>, vector<1x128x128xf32>
    %49 = vector.shape_cast %48 : vector<1x128x128xf32> to vector<128x128xf32>
    %50 = vector.shape_cast %47 : vector<128x128xf32> to vector<1x128x128xf32>
    tpu.vector_store %arg10[%c0_27, %c0_28, %c0_29], %50 {strides = array<i32>} : memref<2x128x128xf32, #tpu.memory_space<vmem>>, vector<1x128x128xf32>,
    %c0_30 = arith.constant 0 : index
    %c0_31 = arith.constant 0 : index
    %c0_32 = arith.constant 0 : index
    %51 = vector.load %arg8[%c0_30, %c0_31, %c0_32] : memref<2x128x1xf32, #tpu.memory_space<vmem>>, vector<1x128x1xf32>
    %52 = vector.shape_cast %51 : vector<1x128x1xf32> to vector<128x1xf32>
    %53 = vector.shape_cast %24 : vector<128x1xf32> to vector<1x128x1xf32>
    tpu.vector_store %arg8[%c0_30, %c0_31, %c0_32], %53 {strides = array<i32>} : memref<2x128x1xf32, #tpu.memory_space<vmem>>, vector<1x128x1xf32>,
    %54 = vector.extract_strided_slice %6 {offsets = [0, 1], sizes = [128, 1], strides = [1, 1]} : vector<128x2xf32> to vector<128x1xf32>
    %55 = vector.extract_strided_slice %7 {offsets = [1, 0], sizes = [1, 128], strides = [1, 1]} : vector<2x128xf32> to vector<1x128xf32>
    %56 = vector.broadcast %54 : vector<128x1xf32> to vector<128x128xf32>
    %57 = vector.broadcast %55 : vector<1x128xf32> to vector<128x128xf32>
    %58 = arith.addf %56, %57 : vector<128x128xf32>
    %cst_33 = arith.constant 0.000000e+00 : f32
    %59 = vector.broadcast %cst_33 : f32 to vector<128x128xf32>
    %60 = arith.cmpf ogt, %58, %59 : vector<128x128xf32>
    %cst_34 = arith.constant 2.000000e-01 : f32
    %61 = vector.broadcast %cst_34 : f32 to vector<128x128xf32>
    %62 = arith.mulf %61, %58 : vector<128x128xf32>
    %63 = arith.select %60, %58, %62 : vector<128x128xi1>, vector<128x128xf32>
    %cst_35 = arith.constant -1.000000e+30 : f32
    %64 = vector.broadcast %cst_35 : f32 to vector<128x128xf32>
    %65 = arith.select %5, %63, %64 : vector<128x128xi1>, vector<128x128xf32>
    %c1 = arith.constant 1 : index
    %c0_36 = arith.constant 0 : index
    %c0_37 = arith.constant 0 : index
    %66 = vector.load %arg8[%c1, %c0_36, %c0_37] : memref<2x128x1xf32, #tpu.memory_space<vmem>>, vector<1x128x1xf32>
    %67 = vector.shape_cast %66 : vector<1x128x1xf32> to vector<128x1xf32>
    %cst_38 = arith.constant dense<0xFF800000> : vector<128xf32>
    %68 = vector.multi_reduction <maximumf>, %65, %cst_38 [1] : vector<128x128xf32> to vector<128xf32>
    %69 = vector.shape_cast %68 : vector<128xf32> to vector<128x1xf32>
    %70 = arith.maximumf %67, %69 : vector<128x1xf32>
    %71 = arith.subf %67, %70 : vector<128x1xf32>
    %72 = math.exp %71 : vector<128x1xf32>
    %73 = vector.broadcast %70 : vector<128x1xf32> to vector<128x128xf32>
    %74 = arith.subf %65, %73 : vector<128x128xf32>
    %75 = math.exp %74 : vector<128x128xf32>
    %c1_39 = arith.constant 1 : index
    %c0_40 = arith.constant 0 : index
    %c0_41 = arith.constant 0 : index
    %76 = vector.load %arg9[%c1_39, %c0_40, %c0_41] : memref<2x128x1xf32, #tpu.memory_space<vmem>>, vector<1x128x1xf32>
    %77 = vector.shape_cast %76 : vector<1x128x1xf32> to vector<128x1xf32>
    %78 = arith.mulf %72, %77 : vector<128x1xf32>
    %cst_42 = arith.constant dense<0.000000e+00> : vector<128xf32>
    %79 = vector.multi_reduction <add>, %75, %cst_42 [1] : vector<128x128xf32> to vector<128xf32>
    %80 = vector.shape_cast %79 : vector<128xf32> to vector<128x1xf32>
    %81 = arith.addf %78, %80 : vector<128x1xf32>
    %c1_43 = arith.constant 1 : index
    %c0_44 = arith.constant 0 : index
    %c0_45 = arith.constant 0 : index
    %82 = vector.load %arg9[%c1_43, %c0_44, %c0_45] : memref<2x128x1xf32, #tpu.memory_space<vmem>>, vector<1x128x1xf32>
    %83 = vector.shape_cast %82 : vector<1x128x1xf32> to vector<128x1xf32>
    %84 = vector.shape_cast %81 : vector<128x1xf32> to vector<1x128x1xf32>
    tpu.vector_store %arg9[%c1_43, %c0_44, %c0_45], %84 {strides = array<i32>} : memref<2x128x1xf32, #tpu.memory_space<vmem>>, vector<1x128x1xf32>,
    %c1_46 = arith.constant 1 : index
    %c0_47 = arith.constant 0 : index
    %c0_48 = arith.constant 0 : index
    %85 = vector.load %arg10[%c1_46, %c0_47, %c0_48] : memref<2x128x128xf32, #tpu.memory_space<vmem>>, vector<1x128x128xf32>
    %86 = vector.shape_cast %85 : vector<1x128x128xf32> to vector<128x128xf32>
    %87 = vector.broadcast %72 : vector<128x1xf32> to vector<128x128xf32>
    %88 = arith.mulf %87, %86 : vector<128x128xf32>
    %89 = arith.truncf %75 : vector<128x128xf32> to vector<128x128xbf16>
    %c1_49 = arith.constant 1 : index
    %c0_50 = arith.constant 0 : index
    %c0_51 = arith.constant 0 : index
    %90 = vector.load %arg5[%c1_49, %c0_50, %c0_51] : memref<2x128x128xbf16, #tpu.memory_space<vmem>>, vector<1x128x128xbf16>
    %91 = vector.shape_cast %90 : vector<1x128x128xbf16> to vector<128x128xbf16>
    %cst_52 = arith.constant dense<0.000000e+00> : vector<128x128xf32>
    %92 = tpu.matmul %89, %91, %cst_52 {dimension_numbers = #tpu.dot_dimension_numbers<[1], [0], [0], [1], [0, 0, 1, 1], [], []>} : vector<128x128xbf16>, vector<128x128xbf16>, vector<128x128xf32> -> vector<128x128xf32>
    %93 = arith.addf %88, %92 : vector<128x128xf32>
    %c1_53 = arith.constant 1 : index
    %c0_54 = arith.constant 0 : index
    %c0_55 = arith.constant 0 : index
    %94 = vector.load %arg10[%c1_53, %c0_54, %c0_55] : memref<2x128x128xf32, #tpu.memory_space<vmem>>, vector<1x128x128xf32>
    %95 = vector.shape_cast %94 : vector<1x128x128xf32> to vector<128x128xf32>
    %96 = vector.shape_cast %93 : vector<128x128xf32> to vector<1x128x128xf32>
    tpu.vector_store %arg10[%c1_53, %c0_54, %c0_55], %96 {strides = array<i32>} : memref<2x128x128xf32, #tpu.memory_space<vmem>>, vector<1x128x128xf32>,
    %c1_56 = arith.constant 1 : index
    %c0_57 = arith.constant 0 : index
    %c0_58 = arith.constant 0 : index
    %97 = vector.load %arg8[%c1_56, %c0_57, %c0_58] : memref<2x128x1xf32, #tpu.memory_space<vmem>>, vector<1x128x1xf32>
    %98 = vector.shape_cast %97 : vector<1x128x1xf32> to vector<128x1xf32>
    %99 = vector.shape_cast %70 : vector<128x1xf32> to vector<1x128x1xf32>
    tpu.vector_store %arg8[%c1_56, %c0_57, %c0_58], %99 {strides = array<i32>} : memref<2x128x1xf32, #tpu.memory_space<vmem>>, vector<1x128x1xf32>,
    %c0_i32_59 = arith.constant 0 : i32
    %100 = arith.cmpi eq, %arg1, %c0_i32_59 : i32
    %101 = arith.extui %100 : i1 to i32
    %c0_i32_60 = arith.constant 0 : i32
    %102 = arith.cmpi ne, %101, %c0_i32_60 : i32
    scf.if %102 {
      %c0_61 = arith.constant 0 : index
      %c0_62 = arith.constant 0 : index
      %c0_63 = arith.constant 0 : index
      %103 = vector.load %arg10[%c0_61, %c0_62, %c0_63] : memref<2x128x128xf32, #tpu.memory_space<vmem>>, vector<1x128x128xf32>
      %104 = vector.shape_cast %103 : vector<1x128x128xf32> to vector<128x128xf32>
      %c0_64 = arith.constant 0 : index
      %c0_65 = arith.constant 0 : index
      %c0_66 = arith.constant 0 : index
      %105 = vector.load %arg9[%c0_64, %c0_65, %c0_66] : memref<2x128x1xf32, #tpu.memory_space<vmem>>, vector<1x128x1xf32>
      %106 = vector.shape_cast %105 : vector<1x128x1xf32> to vector<128x1xf32>
      %107 = tpu.reciprocal %106 {approx = true} : vector<128x1xf32> -> vector<128x1xf32>
      %108 = vector.broadcast %107 : vector<128x1xf32> to vector<128x128xf32>
      %109 = arith.mulf %104, %108 : vector<128x128xf32>
      %c1_67 = arith.constant 1 : index
      %c0_68 = arith.constant 0 : index
      %c0_69 = arith.constant 0 : index
      %110 = vector.load %arg10[%c1_67, %c0_68, %c0_69] : memref<2x128x128xf32, #tpu.memory_space<vmem>>, vector<1x128x128xf32>
      %111 = vector.shape_cast %110 : vector<1x128x128xf32> to vector<128x128xf32>
      %c1_70 = arith.constant 1 : index
      %c0_71 = arith.constant 0 : index
      %c0_72 = arith.constant 0 : index
      %112 = vector.load %arg9[%c1_70, %c0_71, %c0_72] : memref<2x128x1xf32, #tpu.memory_space<vmem>>, vector<1x128x1xf32>
      %113 = vector.shape_cast %112 : vector<1x128x1xf32> to vector<128x1xf32>
      %114 = tpu.reciprocal %113 {approx = true} : vector<128x1xf32> -> vector<128x1xf32>
      %115 = vector.broadcast %114 : vector<128x1xf32> to vector<128x128xf32>
      %116 = arith.mulf %111, %115 : vector<128x128xf32>
      %117 = arith.addf %109, %116 : vector<128x128xf32>
      %cst_73 = arith.constant 5.000000e-01 : f32
      %118 = vector.broadcast %cst_73 : f32 to vector<128x128xf32>
      %119 = arith.mulf %117, %118 : vector<128x128xf32>
      %c0_74 = arith.constant 0 : index
      %c0_75 = arith.constant 0 : index
      %120 = vector.load %arg6[%c0_74, %c0_75] : memref<1x128xf32, #tpu.memory_space<vmem>>, vector<1x128xf32>
      %121 = vector.broadcast %120 : vector<1x128xf32> to vector<128x128xf32>
      %122 = arith.addf %119, %121 : vector<128x128xf32>
      %cst_76 = arith.constant 0.000000e+00 : f32
      %123 = vector.broadcast %cst_76 : f32 to vector<128x128xf32>
      %124 = arith.maximumf %122, %123 : vector<128x128xf32>
      %c0_77 = arith.constant 0 : index
      %c0_78 = arith.constant 0 : index
      %125 = vector.load %arg7[%c0_77, %c0_78] : memref<128x128xf32, #tpu.memory_space<vmem>>, vector<128x128xf32>
      tpu.vector_store %arg7[%c0_77, %c0_78], %124 {strides = array<i32>} : memref<128x128xf32, #tpu.memory_space<vmem>>, vector<128x128xf32>,
    } else {
    }
    return
  }
  func.func @transform_0(%arg0: i32, %arg1: i32) -> (i32, i32) {
    %c0_i32 = arith.constant 0 : i32
    return %arg0, %arg1 : i32, i32
  }
  func.func @transform_1(%arg0: i32, %arg1: i32) -> (i32, i32) {
    %c0_i32 = arith.constant 0 : i32
    %c0_i32_0 = arith.constant 0 : i32
    return %arg0, %c0_i32 : i32, i32
  }
  func.func @transform_2(%arg0: i32, %arg1: i32) -> (i32, i32) {
    %c0_i32 = arith.constant 0 : i32
    %c0_i32_0 = arith.constant 0 : i32
    return %c0_i32, %arg1 : i32, i32
  }
  func.func @transform_3(%arg0: i32, %arg1: i32) -> (i32, i32, i32) {
    %c0_i32 = arith.constant 0 : i32
    %c0_i32_0 = arith.constant 0 : i32
    %c0_i32_1 = arith.constant 0 : i32
    return %c0_i32, %arg1, %c0_i32_0 : i32, i32, i32
  }
  func.func @transform_4(%arg0: i32, %arg1: i32) -> (i32, i32) {
    %c0_i32 = arith.constant 0 : i32
    %c0_i32_0 = arith.constant 0 : i32
    %c0_i32_1 = arith.constant 0 : i32
    return %c0_i32, %c0_i32_0 : i32, i32
  }
  func.func @transform_5(%arg0: i32, %arg1: i32) -> (i32, i32) {
    %c0_i32 = arith.constant 0 : i32
    %c0_i32_0 = arith.constant 0 : i32
    return %arg0, %c0_i32 : i32, i32
  }
}

</mosaic_0001>

<llo_original>
// kernel: tpu_custom_call.1
$region0: #{tpu_custom_call.1}
  #allocation0 [shape = 'u32[]', space=smem, size = 0x4, offset = 0x4, fixed_abs, tag = 'smem constant byte address 0x4 - core index']
  #allocation1 [shape = 'u32[144,128]{1,0:T(1,128)}', space=vmem, size = 0x12000, scoped, tag = 'internal scratch']
  #allocation2 [shape = 'f32[2,128,1]{2,1,0:T(8,128)}', space=vmem, size = 0x20000, scoped, tag = 'scratch operand']
  #allocation3 [shape = 'f32[2,128,1]{2,1,0:T(8,128)}', space=vmem, size = 0x20000, scoped, tag = 'scratch operand']
  #allocation4 [shape = 'f32[2,128,128]{2,1,0:T(8,128)}', space=vmem, size = 0x20000, scoped, tag = 'scratch operand']
  %s0 = inlined_call_operand.hbm [shape: bf16[128,128], index: 0, kind: input, shape index: {}]
  %s1 = inlined_call_operand.vmem [shape: f32[128,2], index: 1, kind: input, shape index: {}]
  %s2 = inlined_call_operand.vmem [shape: f32[2,128], index: 2, kind: input, shape index: {}]
  %s3 = inlined_call_operand.vmem [shape: bf16[2,128,128], index: 3, kind: input, shape index: {}]
  %s4 = inlined_call_operand.vmem [shape: f32[1,128], index: 4, kind: input, shape index: {}]
  %s5 = inlined_call_operand.hbm [shape: f32[128,128], index: 5, kind: output, shape index: {}]
  %s6 = sld [smem:[#allocation0]]
  $region42: #{tpu_custom_call.1} parent=0
    _
  %s8 = ssub.s32 1, %s6
  %s9 = scalar_select 0, %s8, %s6
  $region1: #{tpu_custom_call.1} parent=0
    #allocation5 [shape = 'u8[32768]{0}', space=vmem, size = 0x8000, scoped, tag = 'input window, operand 0, single buffered']
    #allocation6 [shape = 's32[1]{0}', space=sflag, size = 0x4, scoped, tag = 'scoped memory for tpu_custom_call.1']
    #allocation7 [shape = 's32[1]{0}', space=sflag, size = 0x4, scoped, tag = 'scoped memory for tpu_custom_call.1']
    #allocation8 [shape = 'u8[65536]{0}', space=vmem, size = 0x10000, scoped, tag = 'output window, operand 0, single buffered']
    %10 = vsyncpa [#allocation6], 0
    %11 = vsyncpa [#allocation7], 0
    // Predicated region
    $region2: #{tpu_custom_call.1} parent=1 // pred_check
      _
    $region3: #{tpu_custom_call.1} parent=1 // pred_check_branch
      %13 = sbr.rel (0) target = $region5
    $region4: #{tpu_custom_call.1} parent=1 // pred_region
      %s15 = ssub.s32 1024, 1024
      %16 = vsyncadd [#allocation6], %s15
      %s17 = sshll.u32 [#allocation5], 4
      %s18 = int_to_ptr.vmem [resolvable:$true] %s17
      %23 = dma.hbm_to_vmem [thread:$0]  %s0, 1024, %s18, [#allocation6], 64, 64, 4
    $region5: #{tpu_custom_call.1} parent=1 // pred_fallthru
      _
    // Predicated region
    $region6: #{tpu_custom_call.1} parent=1 // pred_check
      _
    $region7: #{tpu_custom_call.1} parent=1 // pred_check_branch
      %25 = sbr.rel (0) target = $region9
    $region8: #{tpu_custom_call.1} parent=1 // pred_region
      _
    $region9: #{tpu_custom_call.1} parent=1 // pred_fallthru
      _
    // Predicated region
    $region10: #{tpu_custom_call.1} parent=1 // pred_check
      _
    $region11: #{tpu_custom_call.1} parent=1 // pred_check_branch
      %27 = sbr.rel (0) target = $region13
    $region12: #{tpu_custom_call.1} parent=1 // pred_region
      _
    $region13: #{tpu_custom_call.1} parent=1 // pred_fallthru
      _
    // Predicated region
    $region14: #{tpu_custom_call.1} parent=1 // pred_check
      _
    $region15: #{tpu_custom_call.1} parent=1 // pred_check_branch
      %29 = sbr.rel (0) target = $region17
    $region16: #{tpu_custom_call.1} parent=1 // pred_region
      _
    $region17: #{tpu_custom_call.1} parent=1 // pred_fallthru
      _
    // Predicated region
    $region18: #{tpu_custom_call.1} parent=1 // pred_check
      _
    $region19: #{tpu_custom_call.1} parent=1 // pred_check_branch
      %31 = sbr.rel (0) target = $region21
    $region20: #{tpu_custom_call.1} parent=1 // pred_region
      _
    $region21: #{tpu_custom_call.1} parent=1 // pred_fallthru
      _
    // Predicated region
    $region22: #{tpu_custom_call.1} parent=1 // pred_check
      _
    $region23: #{tpu_custom_call.1} parent=1 // pred_check_branch
      %33 = sbr.rel (0) target = $region25
    $region24: #{tpu_custom_call.1} parent=1 // pred_region
      %34 = dma.done [#allocation6], 1024
    $region25: #{tpu_custom_call.1} parent=1 // pred_fallthru
      _
    %p38 = scmp.eq.s32.totalorder 0, 0
    // Predicated region
    $region26: #{tpu_custom_call.1} parent=1 // pred_check
      %p39 = pneg %p38
    $region27: #{tpu_custom_call.1} parent=1 // pred_check_branch
      %41 = sbr.rel (%p39) target = $region29
    $region28: #{tpu_custom_call.1} parent=1 // pred_region
      %vm42 = vcmask 7168
      %43 = vst.msk [vmem:[#allocation2] sm:$0xff] %vm42, -1e+30
      %44 = vst.msk [vmem:[#allocation2 + $0x8] sm:$0xff] %vm42, -1e+30
      %45 = vst.msk [vmem:[#allocation2 + $0x10] sm:$0xff] %vm42, -1e+30
      %46 = vst.msk [vmem:[#allocation2 + $0x18] sm:$0xff] %vm42, -1e+30
      %47 = vst.msk [vmem:[#allocation2 + $0x20] sm:$0xff] %vm42, -1e+30
      %48 = vst.msk [vmem:[#allocation2 + $0x28] sm:$0xff] %vm42, -1e+30
      %49 = vst.msk [vmem:[#allocation2 + $0x30] sm:$0xff] %vm42, -1e+30
      %50 = vst.msk [vmem:[#allocation2 + $0x38] sm:$0xff] %vm42, -1e+30
      %51 = vst.msk [vmem:[#allocation2 + $0x40] sm:$0xff] %vm42, -1e+30
      %52 = vst.msk [vmem:[#allocation2 + $0x48] sm:$0xff] %vm42, -1e+30
      %53 = vst.msk [vmem:[#allocation2 + $0x50] sm:$0xff] %vm42, -1e+30
      %54 = vst.msk [vmem:[#allocation2 + $0x58] sm:$0xff] %vm42, -1e+30
      %55 = vst.msk [vmem:[#allocation2 + $0x60] sm:$0xff] %vm42, -1e+30
      %56 = vst.msk [vmem:[#allocation2 + $0x68] sm:$0xff] %vm42, -1e+30
      %57 = vst.msk [vmem:[#allocation2 + $0x70] sm:$0xff] %vm42, -1e+30
      %58 = vst.msk [vmem:[#allocation2 + $0x78] sm:$0xff] %vm42, -1e+30
      %59 = vst.msk [vmem:[#allocation2 + $0x80] sm:$0xff] %vm42, -1e+30
      %60 = vst.msk [vmem:[#allocation2 + $0x88] sm:$0xff] %vm42, -1e+30
      %61 = vst.msk [vmem:[#allocation2 + $0x90] sm:$0xff] %vm42, -1e+30
      %62 = vst.msk [vmem:[#allocation2 + $0x98] sm:$0xff] %vm42, -1e+30
      %63 = vst.msk [vmem:[#allocation2 + $0xa0] sm:$0xff] %vm42, -1e+30
      %64 = vst.msk [vmem:[#allocation2 + $0xa8] sm:$0xff] %vm42, -1e+30
      %65 = vst.msk [vmem:[#allocation2 + $0xb0] sm:$0xff] %vm42, -1e+30
      %66 = vst.msk [vmem:[#allocation2 + $0xb8] sm:$0xff] %vm42, -1e+30
      %67 = vst.msk [vmem:[#allocation2 + $0xc0] sm:$0xff] %vm42, -1e+30
      %68 = vst.msk [vmem:[#allocation2 + $0xc8] sm:$0xff] %vm42, -1e+30
      %69 = vst.msk [vmem:[#allocation2 + $0xd0] sm:$0xff] %vm42, -1e+30
      %70 = vst.msk [vmem:[#allocation2 + $0xd8] sm:$0xff] %vm42, -1e+30
      %71 = vst.msk [vmem:[#allocation2 + $0xe0] sm:$0xff] %vm42, -1e+30
      %72 = vst.msk [vmem:[#allocation2 + $0xe8] sm:$0xff] %vm42, -1e+30
      %73 = vst.msk [vmem:[#allocation2 + $0xf0] sm:$0xff] %vm42, -1e+30
      %74 = vst.msk [vmem:[#allocation2 + $0xf8] sm:$0xff] %vm42, -1e+30
      %75 = vst.msk [vmem:[#allocation3] sm:$0xff] %vm42, 0.0
      %76 = vst.msk [vmem:[#allocation3 + $0x8] sm:$0xff] %vm42, 0.0
      %77 = vst.msk [vmem:[#allocation3 + $0x10] sm:$0xff] %vm42, 0.0
      %78 = vst.msk [vmem:[#allocation3 + $0x18] sm:$0xff] %vm42, 0.0
      %79 = vst.msk [vmem:[#allocation3 + $0x20] sm:$0xff] %vm42, 0.0
      %80 = vst.msk [vmem:[#allocation3 + $0x28] sm:$0xff] %vm42, 0.0
      %81 = vst.msk [vmem:[#allocation3 + $0x30] sm:$0xff] %vm42, 0.0
      %82 = vst.msk [vmem:[#allocation3 + $0x38] sm:$0xff] %vm42, 0.0
      %83 = vst.msk [vmem:[#allocation3 + $0x40] sm:$0xff] %vm42, 0.0
      %84 = vst.msk [vmem:[#allocation3 + $0x48] sm:$0xff] %vm42, 0.0
      %85 = vst.msk [vmem:[#allocation3 + $0x50] sm:$0xff] %vm42, 0.0
      %86 = vst.msk [vmem:[#allocation3 + $0x58] sm:$0xff] %vm42, 0.0
      %87 = vst.msk [vmem:[#allocation3 + $0x60] sm:$0xff] %vm42, 0.0
      %88 = vst.msk [vmem:[#allocation3 + $0x68] sm:$0xff] %vm42, 0.0
      %89 = vst.msk [vmem:[#allocation3 + $0x70] sm:$0xff] %vm42, 0.0
      %90 = vst.msk [vmem:[#allocation3 + $0x78] sm:$0xff] %vm42, 0.0
      %91 = vst.msk [vmem:[#allocation3 + $0x80] sm:$0xff] %vm42, 0.0
      %92 = vst.msk [vmem:[#allocation3 + $0x88] sm:$0xff] %vm42, 0.0
      %93 = vst.msk [vmem:[#allocation3 + $0x90] sm:$0xff] %vm42, 0.0
      %94 = vst.msk [vmem:[#allocation3 + $0x98] sm:$0xff] %vm42, 0.0
      %95 = vst.msk [vmem:[#allocation3 + $0xa0] sm:$0xff] %vm42, 0.0
      %96 = vst.msk [vmem:[#allocation3 + $0xa8] sm:$0xff] %vm42, 0.0
      %97 = vst.msk [vmem:[#allocation3 + $0xb0] sm:$0xff] %vm42, 0.0
      %98 = vst.msk [vmem:[#allocation3 + $0xb8] sm:$0xff] %vm42, 0.0
      %99 = vst.msk [vmem:[#allocation3 + $0xc0] sm:$0xff] %vm42, 0.0
      %100 = vst.msk [vmem:[#allocation3 + $0xc8] sm:$0xff] %vm42, 0.0
      %101 = vst.msk [vmem:[#allocation3 + $0xd0] sm:$0xff] %vm42, 0.0
      %102 = vst.msk [vmem:[#allocation3 + $0xd8] sm:$0xff] %vm42, 0.0
      %103 = vst.msk [vmem:[#allocation3 + $0xe0] sm:$0xff] %vm42, 0.0
      %104 = vst.msk [vmem:[#allocation3 + $0xe8] sm:$0xff] %vm42, 0.0
      %105 = vst.msk [vmem:[#allocation3 + $0xf0] sm:$0xff] %vm42, 0.0
      %106 = vst.msk [vmem:[#allocation3 + $0xf8] sm:$0xff] %vm42, 0.0
      %107 = vst [vmem:[#allocation4] sm:$0xff] 0.0
      %108 = vst [vmem:[#allocation4 + $0x8] sm:$0xff] 0.0
      %109 = vst [vmem:[#allocation4 + $0x10] sm:$0xff] 0.0
      %110 = vst [vmem:[#allocation4 + $0x18] sm:$0xff] 0.0
      %111 = vst [vmem:[#allocation4 + $0x20] sm:$0xff] 0.0
      %112 = vst [vmem:[#allocation4 + $0x28] sm:$0xff] 0.0
      %113 = vst [vmem:[#allocation4 + $0x30] sm:$0xff] 0.0
      %114 = vst [vmem:[#allocation4 + $0x38] sm:$0xff] 0.0
      %115 = vst [vmem:[#allocation4 + $0x40] sm:$0xff] 0.0
      %116 = vst [vmem:[#allocation4 + $0x48] sm:$0xff] 0.0
      %117 = vst [vmem:[#allocation4 + $0x50] sm:$0xff] 0.0
      %118 = vst [vmem:[#allocation4 + $0x58] sm:$0xff] 0.0
      %119 = vst [vmem:[#allocation4 + $0x60] sm:$0xff] 0.0
      %120 = vst [vmem:[#allocation4 + $0x68] sm:$0xff] 0.0
      %121 = vst [vmem:[#allocation4 + $0x70] sm:$0xff] 0.0
      %122 = vst [vmem:[#allocation4 + $0x78] sm:$0xff] 0.0
      %123 = vst [vmem:[#allocation4 + $0x80] sm:$0xff] 0.0
      %124 = vst [vmem:[#allocation4 + $0x88] sm:$0xff] 0.0
      %125 = vst [vmem:[#allocation4 + $0x90] sm:$0xff] 0.0
      %126 = vst [vmem:[#allocation4 + $0x98] sm:$0xff] 0.0
      %127 = vst [vmem:[#allocation4 + $0xa0] sm:$0xff] 0.0
      %128 = vst [vmem:[#allocation4 + $0xa8] sm:$0xff] 0.0
      %129 = vst [vmem:[#allocation4 + $0xb0] sm:$0xff] 0.0
      %130 = vst [vmem:[#allocation4 + $0xb8] sm:$0xff] 0.0
      %131 = vst [vmem:[#allocation4 + $0xc0] sm:$0xff] 0.0
      %132 = vst [vmem:[#allocation4 + $0xc8] sm:$0xff] 0.0
      %133 = vst [vmem:[#allocation4 + $0xd0] sm:$0xff] 0.0
      %134 = vst [vmem:[#allocation4 + $0xd8] sm:$0xff] 0.0
      %135 = vst [vmem:[#allocation4 + $0xe0] sm:$0xff] 0.0
      %136 = vst [vmem:[#allocation4 + $0xe8] sm:$0xff] 0.0
      %137 = vst [vmem:[#allocation4 + $0xf0] sm:$0xff] 0.0
      %138 = vst [vmem:[#allocation4 + $0xf8] sm:$0xff] 0.0
    $region29: #{tpu_custom_call.1} parent=1 // pred_fallthru
      _
    %v139 = vld [vmem:[#allocation5] sm:$0xf]
    %v140 = vld [vmem:[#allocation5 + $0x4] sm:$0xf]
    %v141 = vld [vmem:[#allocation5 + $0x8] sm:$0xf]
    %v142 = vld [vmem:[#allocation5 + $0xc] sm:$0xf]
    %v143 = vld [vmem:[#allocation5 + $0x10] sm:$0xf]
    %v144 = vld [vmem:[#allocation5 + $0x14] sm:$0xf]
    %v145 = vld [vmem:[#allocation5 + $0x18] sm:$0xf]
    %v146 = vld [vmem:[#allocation5 + $0x1c] sm:$0xf]
    %v147 = vld [vmem:[#allocation5 + $0x20] sm:$0xf]
    %v148 = vld [vmem:[#allocation5 + $0x24] sm:$0xf]
    %v149 = vld [vmem:[#allocation5 + $0x28] sm:$0xf]
    %v150 = vld [vmem:[#allocation5 + $0x2c] sm:$0xf]
    %v151 = vld [vmem:[#allocation5 + $0x30] sm:$0xf]
    %v152 = vld [vmem:[#allocation5 + $0x34] sm:$0xf]
    %v153 = vld [vmem:[#allocation5 + $0x38] sm:$0xf]
    %v154 = vld [vmem:[#allocation5 + $0x3c] sm:$0xf]
    %vm155 = vcmp.gt.bf16.partialorder %v139, 0
    %vm156 = vcmp.gt.bf16.partialorder %v140, 0
    %vm157 = vcmp.gt.bf16.partialorder %v141, 0
    %vm158 = vcmp.gt.bf16.partialorder %v142, 0
    %vm159 = vcmp.gt.bf16.partialorder %v143, 0
    %vm160 = vcmp.gt.bf16.partialorder %v144, 0
    %vm161 = vcmp.gt.bf16.partialorder %v145, 0
    %vm162 = vcmp.gt.bf16.partialorder %v146, 0
    %vm163 = vcmp.gt.bf16.partialorder %v147, 0
    %vm164 = vcmp.gt.bf16.partialorder %v148, 0
    %vm165 = vcmp.gt.bf16.partialorder %v149, 0
    %vm166 = vcmp.gt.bf16.partialorder %v150, 0
    %vm167 = vcmp.gt.bf16.partialorder %v151, 0
    %vm168 = vcmp.gt.bf16.partialorder %v152, 0
    %vm169 = vcmp.gt.bf16.partialorder %v153, 0
    %vm170 = vcmp.gt.bf16.partialorder %v154, 0
    %v171 = vld [vmem:[%s1] sm:$0xff]
    %v172 = vld [vmem:[%s1 + $0x8] sm:$0xff]
    %v173 = vld [vmem:[%s1 + $0x10] sm:$0xff]
    %v174 = vld [vmem:[%s1 + $0x18] sm:$0xff]
    %v175 = vld [vmem:[%s1 + $0x20] sm:$0xff]
    %v176 = vld [vmem:[%s1 + $0x28] sm:$0xff]
    %v177 = vld [vmem:[%s1 + $0x30] sm:$0xff]
    %v178 = vld [vmem:[%s1 + $0x38] sm:$0xff]
    %v179 = vld [vmem:[%s1 + $0x40] sm:$0xff]
    %v180 = vld [vmem:[%s1 + $0x48] sm:$0xff]
    %v181 = vld [vmem:[%s1 + $0x50] sm:$0xff]
    %v182 = vld [vmem:[%s1 + $0x58] sm:$0xff]
    %v183 = vld [vmem:[%s1 + $0x60] sm:$0xff]
    %v184 = vld [vmem:[%s1 + $0x68] sm:$0xff]
    %v185 = vld [vmem:[%s1 + $0x70] sm:$0xff]
    %v186 = vld [vmem:[%s1 + $0x78] sm:$0xff]
    %v187 = vld [vmem:[%s2] sm:$0x3]
    %189 = vset.pattern.permute.xlu0 0
    %190 = vperm.xlu0 %189, %v171
    %v191 = vpop.permute.xlu0 %190
    %194 = vset.pattern.permute.xlu0 0
    %195 = vperm.xlu0 %194, %v172
    %v196 = vpop.permute.xlu0 %195
    %199 = vset.pattern.permute.xlu0 0
    %200 = vperm.xlu0 %199, %v173
    %v201 = vpop.permute.xlu0 %200
    %204 = vset.pattern.permute.xlu0 0
    %205 = vperm.xlu0 %204, %v174
    %v206 = vpop.permute.xlu0 %205
    %209 = vset.pattern.permute.xlu0 0
    %210 = vperm.xlu0 %209, %v175
    %v211 = vpop.permute.xlu0 %210
    %214 = vset.pattern.permute.xlu0 0
    %215 = vperm.xlu0 %214, %v176
    %v216 = vpop.permute.xlu0 %215
    %219 = vset.pattern.permute.xlu0 0
    %220 = vperm.xlu0 %219, %v177
    %v221 = vpop.permute.xlu0 %220
    %224 = vset.pattern.permute.xlu0 0
    %225 = vperm.xlu0 %224, %v178
    %v226 = vpop.permute.xlu0 %225
    %229 = vset.pattern.permute.xlu0 0
    %230 = vperm.xlu0 %229, %v179
    %v231 = vpop.permute.xlu0 %230
    %234 = vset.pattern.permute.xlu0 0
    %235 = vperm.xlu0 %234, %v180
    %v236 = vpop.permute.xlu0 %235
    %239 = vset.pattern.permute.xlu0 0
    %240 = vperm.xlu0 %239, %v181
    %v241 = vpop.permute.xlu0 %240
    %244 = vset.pattern.permute.xlu0 0
    %245 = vperm.xlu0 %244, %v182
    %v246 = vpop.permute.xlu0 %245
    %249 = vset.pattern.permute.xlu0 0
    %250 = vperm.xlu0 %249, %v183
    %v251 = vpop.permute.xlu0 %250
    %254 = vset.pattern.permute.xlu0 0
    %255 = vperm.xlu0 %254, %v184
    %v256 = vpop.permute.xlu0 %255
    %259 = vset.pattern.permute.xlu0 0
    %260 = vperm.xlu0 %259, %v185
    %v261 = vpop.permute.xlu0 %260
    %264 = vset.pattern.permute.xlu0 0
    %265 = vperm.xlu0 %264, %v186
    %v266 = vpop.permute.xlu0 %265
    %v268 = vlaneseq
    %v269 = vshrl.u32 %v268, 7
    %v270 = vsub.s32 0, %v269
    %v271 = vrot.slane %v187, %v270
    %v272 = vadd.f32 %v191, %v271
    %v273 = vadd.f32 %v196, %v271
    %v274 = vadd.f32 %v201, %v271
    %v275 = vadd.f32 %v206, %v271
    %v276 = vadd.f32 %v211, %v271
    %v277 = vadd.f32 %v216, %v271
    %v278 = vadd.f32 %v221, %v271
    %v279 = vadd.f32 %v226, %v271
    %v280 = vadd.f32 %v231, %v271
    %v281 = vadd.f32 %v236, %v271
    %v282 = vadd.f32 %v241, %v271
    %v283 = vadd.f32 %v246, %v271
    %v284 = vadd.f32 %v251, %v271
    %v285 = vadd.f32 %v256, %v271
    %v286 = vadd.f32 %v261, %v271
    %v287 = vadd.f32 %v266, %v271
    %vm288 = vcmp.gt.f32.partialorder %v272, 0.0
    %vm289 = vcmp.gt.f32.partialorder %v273, 0.0
    %vm290 = vcmp.gt.f32.partialorder %v274, 0.0
    %vm291 = vcmp.gt.f32.partialorder %v275, 0.0
    %vm292 = vcmp.gt.f32.partialorder %v276, 0.0
    %vm293 = vcmp.gt.f32.partialorder %v277, 0.0
    %vm294 = vcmp.gt.f32.partialorder %v278, 0.0
    %vm295 = vcmp.gt.f32.partialorder %v279, 0.0
    %vm296 = vcmp.gt.f32.partialorder %v280, 0.0
    %vm297 = vcmp.gt.f32.partialorder %v281, 0.0
    %vm298 = vcmp.gt.f32.partialorder %v282, 0.0
    %vm299 = vcmp.gt.f32.partialorder %v283, 0.0
    %vm300 = vcmp.gt.f32.partialorder %v284, 0.0
    %vm301 = vcmp.gt.f32.partialorder %v285, 0.0
    %vm302 = vcmp.gt.f32.partialorder %v286, 0.0
    %vm303 = vcmp.gt.f32.partialorder %v287, 0.0
    %v304 = vmul.f32 %v272, 0.2
    %v305 = vmul.f32 %v273, 0.2
    %v306 = vmul.f32 %v274, 0.2
    %v307 = vmul.f32 %v275, 0.2
    %v308 = vmul.f32 %v276, 0.2
    %v309 = vmul.f32 %v277, 0.2
    %v310 = vmul.f32 %v278, 0.2
    %v311 = vmul.f32 %v279, 0.2
    %v312 = vmul.f32 %v280, 0.2
    %v313 = vmul.f32 %v281, 0.2
    %v314 = vmul.f32 %v282, 0.2
    %v315 = vmul.f32 %v283, 0.2
    %v316 = vmul.f32 %v284, 0.2
    %v317 = vmul.f32 %v285, 0.2
    %v318 = vmul.f32 %v286, 0.2
    %v319 = vmul.f32 %v287, 0.2
    %v320 = vsel %vm288, %v272, %v304
    %v321 = vsel %vm289, %v273, %v305
    %v322 = vsel %vm290, %v274, %v306
    %v323 = vsel %vm291, %v275, %v307
    %v324 = vsel %vm292, %v276, %v308
    %v325 = vsel %vm293, %v277, %v309
    %v326 = vsel %vm294, %v278, %v310
    %v327 = vsel %vm295, %v279, %v311
    %v328 = vsel %vm296, %v280, %v312
    %v329 = vsel %vm297, %v281, %v313
    %v330 = vsel %vm298, %v282, %v314
    %v331 = vsel %vm299, %v283, %v315
    %v332 = vsel %vm300, %v284, %v316
    %v333 = vsel %vm301, %v285, %v317
    %v334 = vsel %vm302, %v286, %v318
    %v335 = vsel %vm303, %v287, %v319
    %v336 = vsel %vm155, 65537, 0
    %v337 = vsel %vm156, 65537, 0
    %v338 = vsel %vm157, 65537, 0
    %v339 = vsel %vm158, 65537, 0
    %v340 = vsel %vm159, 65537, 0
    %v341 = vsel %vm160, 65537, 0
    %v342 = vsel %vm161, 65537, 0
    %v343 = vsel %vm162, 65537, 0
    %v344 = vsel %vm163, 65537, 0
    %v345 = vsel %vm164, 65537, 0
    %v346 = vsel %vm165, 65537, 0
    %v347 = vsel %vm166, 65537, 0
    %v348 = vsel %vm167, 65537, 0
    %v349 = vsel %vm168, 65537, 0
    %v350 = vsel %vm169, 65537, 0
    %v351 = vsel %vm170, 65537, 0
    %v352 = vunpack.c.l.b16 %v336
    %v353 = vunpack.c.l.b16 %v337
    %v354 = vunpack.c.l.b16 %v338
    %v355 = vunpack.c.l.b16 %v339
    %v356 = vunpack.c.l.b16 %v340
    %v357 = vunpack.c.l.b16 %v341
    %v358 = vunpack.c.l.b16 %v342
    %v359 = vunpack.c.l.b16 %v343
    %v360 = vunpack.c.l.b16 %v344
    %v361 = vunpack.c.l.b16 %v345
    %v362 = vunpack.c.l.b16 %v346
    %v363 = vunpack.c.l.b16 %v347
    %v364 = vunpack.c.l.b16 %v348
    %v365 = vunpack.c.l.b16 %v349
    %v366 = vunpack.c.l.b16 %v350
    %v367 = vunpack.c.l.b16 %v351
    %vm368 = vcmp.ne.s32.totalorder %v352, 0
    %vm369 = vcmp.ne.s32.totalorder %v353, 0
    %vm370 = vcmp.ne.s32.totalorder %v354, 0
    %vm371 = vcmp.ne.s32.totalorder %v355, 0
    %vm372 = vcmp.ne.s32.totalorder %v356, 0
    %vm373 = vcmp.ne.s32.totalorder %v357, 0
    %vm374 = vcmp.ne.s32.totalorder %v358, 0
    %vm375 = vcmp.ne.s32.totalorder %v359, 0
    %vm376 = vcmp.ne.s32.totalorder %v360, 0
    %vm377 = vcmp.ne.s32.totalorder %v361, 0
    %vm378 = vcmp.ne.s32.totalorder %v362, 0
    %vm379 = vcmp.ne.s32.totalorder %v363, 0
    %vm380 = vcmp.ne.s32.totalorder %v364, 0
    %vm381 = vcmp.ne.s32.totalorder %v365, 0
    %vm382 = vcmp.ne.s32.totalorder %v366, 0
    %vm383 = vcmp.ne.s32.totalorder %v367, 0
    %v384 = vsel %vm368, %v320, -1e+30
    %v385 = vsel %vm369, %v321, -1e+30
    %v386 = vsel %vm370, %v322, -1e+30
    %v387 = vsel %vm371, %v323, -1e+30
    %v388 = vsel %vm372, %v324, -1e+30
    %v389 = vsel %vm373, %v325, -1e+30
    %v390 = vsel %vm374, %v326, -1e+30
    %v391 = vsel %vm375, %v327, -1e+30
    %v392 = vsel %vm376, %v328, -1e+30
    %v393 = vsel %vm377, %v329, -1e+30
    %v394 = vsel %vm378, %v330, -1e+30
    %v395 = vsel %vm379, %v331, -1e+30
    %v396 = vsel %vm380, %v332, -1e+30
    %v397 = vsel %vm381, %v333, -1e+30
    %v398 = vsel %vm382, %v334, -1e+30
    %v399 = vsel %vm383, %v335, -1e+30
    %v400 = vld [vmem:[#allocation2] sm:$0xff]
    %v401 = vld [vmem:[#allocation2 + $0x8] sm:$0xff]
    %v402 = vld [vmem:[#allocation2 + $0x10] sm:$0xff]
    %v403 = vld [vmem:[#allocation2 + $0x18] sm:$0xff]
    %v404 = vld [vmem:[#allocation2 + $0x20] sm:$0xff]
    %v405 = vld [vmem:[#allocation2 + $0x28] sm:$0xff]
    %v406 = vld [vmem:[#allocation2 + $0x30] sm:$0xff]
    %v407 = vld [vmem:[#allocation2 + $0x38] sm:$0xff]
    %v408 = vld [vmem:[#allocation2 + $0x40] sm:$0xff]
    %v409 = vld [vmem:[#allocation2 + $0x48] sm:$0xff]
    %v410 = vld [vmem:[#allocation2 + $0x50] sm:$0xff]
    %v411 = vld [vmem:[#allocation2 + $0x58] sm:$0xff]
    %v412 = vld [vmem:[#allocation2 + $0x60] sm:$0xff]
    %v413 = vld [vmem:[#allocation2 + $0x68] sm:$0xff]
    %v414 = vld [vmem:[#allocation2 + $0x70] sm:$0xff]
    %v415 = vld [vmem:[#allocation2 + $0x78] sm:$0xff]
    %416 = vmax.xlane.f32.xlu0 %v384
    %v417 = vpop.xlane.xlu0 %416
    %418 = vmax.xlane.f32.xlu0 %v385
    %v419 = vpop.xlane.xlu0 %418
    %420 = vmax.xlane.f32.xlu0 %v386
    %v421 = vpop.xlane.xlu0 %420
    %422 = vmax.xlane.f32.xlu0 %v387
    %v423 = vpop.xlane.xlu0 %422
    %424 = vmax.xlane.f32.xlu0 %v388
    %v425 = vpop.xlane.xlu0 %424
    %426 = vmax.xlane.f32.xlu0 %v389
    %v427 = vpop.xlane.xlu0 %426
    %428 = vmax.xlane.f32.xlu0 %v390
    %v429 = vpop.xlane.xlu0 %428
    %430 = vmax.xlane.f32.xlu0 %v391
    %v431 = vpop.xlane.xlu0 %430
    %432 = vmax.xlane.f32.xlu0 %v392
    %v433 = vpop.xlane.xlu0 %432
    %434 = vmax.xlane.f32.xlu0 %v393
    %v435 = vpop.xlane.xlu0 %434
    %436 = vmax.xlane.f32.xlu0 %v394
    %v437 = vpop.xlane.xlu0 %436
    %438 = vmax.xlane.f32.xlu0 %v395
    %v439 = vpop.xlane.xlu0 %438
    %440 = vmax.xlane.f32.xlu0 %v396
    %v441 = vpop.xlane.xlu0 %440
    %442 = vmax.xlane.f32.xlu0 %v397
    %v443 = vpop.xlane.xlu0 %442
    %444 = vmax.xlane.f32.xlu0 %v398
    %v445 = vpop.xlane.xlu0 %444
    %446 = vmax.xlane.f32.xlu0 %v399
    %v447 = vpop.xlane.xlu0 %446
    %v448 = vmax.f32 %v400, %v417
    %v449 = vmax.f32 %v401, %v419
    %v450 = vmax.f32 %v402, %v421
    %v451 = vmax.f32 %v403, %v423
    %v452 = vmax.f32 %v404, %v425
    %v453 = vmax.f32 %v405, %v427
    %v454 = vmax.f32 %v406, %v429
    %v455 = vmax.f32 %v407, %v431
    %v456 = vmax.f32 %v408, %v433
    %v457 = vmax.f32 %v409, %v435
    %v458 = vmax.f32 %v410, %v437
    %v459 = vmax.f32 %v411, %v439
    %v460 = vmax.f32 %v412, %v441
    %v461 = vmax.f32 %v413, %v443
    %v462 = vmax.f32 %v414, %v445
    %v463 = vmax.f32 %v415, %v447
    %v464 = vsub.f32 %v400, %v448
    %v465 = vsub.f32 %v401, %v449
    %v466 = vsub.f32 %v402, %v450
    %v467 = vsub.f32 %v403, %v451
    %v468 = vsub.f32 %v404, %v452
    %v469 = vsub.f32 %v405, %v453
    %v470 = vsub.f32 %v406, %v454
    %v471 = vsub.f32 %v407, %v455
    %v472 = vsub.f32 %v408, %v456
    %v473 = vsub.f32 %v409, %v457
    %v474 = vsub.f32 %v410, %v458
    %v475 = vsub.f32 %v411, %v459
    %v476 = vsub.f32 %v412, %v460
    %v477 = vsub.f32 %v413, %v461
    %v478 = vsub.f32 %v414, %v462
    %v479 = vsub.f32 %v415, %v463
    %v480 = vmul.f32 %v464, 1.442695
    %v481 = vpow.pop %v480
    %v482 = vmul.f32 %v465, 1.442695
    %v483 = vpow.pop %v482
    %v484 = vmul.f32 %v466, 1.442695
    %v485 = vpow.pop %v484
    %v486 = vmul.f32 %v467, 1.442695
    %v487 = vpow.pop %v486
    %v488 = vmul.f32 %v468, 1.442695
    %v489 = vpow.pop %v488
    %v490 = vmul.f32 %v469, 1.442695
    %v491 = vpow.pop %v490
    %v492 = vmul.f32 %v470, 1.442695
    %v493 = vpow.pop %v492
    %v494 = vmul.f32 %v471, 1.442695
    %v495 = vpow.pop %v494
    %v496 = vmul.f32 %v472, 1.442695
    %v497 = vpow.pop %v496
    %v498 = vmul.f32 %v473, 1.442695
    %v499 = vpow.pop %v498
    %v500 = vmul.f32 %v474, 1.442695
    %v501 = vpow.pop %v500
    %v502 = vmul.f32 %v475, 1.442695
    %v503 = vpow.pop %v502
    %v504 = vmul.f32 %v476, 1.442695
    %v505 = vpow.pop %v504
    %v506 = vmul.f32 %v477, 1.442695
    %v507 = vpow.pop %v506
    %v508 = vmul.f32 %v478, 1.442695
    %v509 = vpow.pop %v508
    %v510 = vmul.f32 %v479, 1.442695
    %v511 = vpow.pop %v510
    %513 = vset.pattern.permute.xlu0 0
    %514 = vperm.xlu0 %513, %v448
    %v515 = vpop.permute.xlu0 %514
    %518 = vset.pattern.permute.xlu0 0
    %519 = vperm.xlu0 %518, %v449
    %v520 = vpop.permute.xlu0 %519
    %523 = vset.pattern.permute.xlu0 0
    %524 = vperm.xlu0 %523, %v450
    %v525 = vpop.permute.xlu0 %524
    %528 = vset.pattern.permute.xlu0 0
    %529 = vperm.xlu0 %528, %v451
    %v530 = vpop.permute.xlu0 %529
    %533 = vset.pattern.permute.xlu0 0
    %534 = vperm.xlu0 %533, %v452
    %v535 = vpop.permute.xlu0 %534
    %538 = vset.pattern.permute.xlu0 0
    %539 = vperm.xlu0 %538, %v453
    %v540 = vpop.permute.xlu0 %539
    %543 = vset.pattern.permute.xlu0 0
    %544 = vperm.xlu0 %543, %v454
    %v545 = vpop.permute.xlu0 %544
    %548 = vset.pattern.permute.xlu0 0
    %549 = vperm.xlu0 %548, %v455
    %v550 = vpop.permute.xlu0 %549
    %553 = vset.pattern.permute.xlu0 0
    %554 = vperm.xlu0 %553, %v456
    %v555 = vpop.permute.xlu0 %554
    %558 = vset.pattern.permute.xlu0 0
    %559 = vperm.xlu0 %558, %v457
    %v560 = vpop.permute.xlu0 %559
    %563 = vset.pattern.permute.xlu0 0
    %564 = vperm.xlu0 %563, %v458
    %v565 = vpop.permute.xlu0 %564
    %568 = vset.pattern.permute.xlu0 0
    %569 = vperm.xlu0 %568, %v459
    %v570 = vpop.permute.xlu0 %569
    %573 = vset.pattern.permute.xlu0 0
    %574 = vperm.xlu0 %573, %v460
    %v575 = vpop.permute.xlu0 %574
    %578 = vset.pattern.permute.xlu0 0
    %579 = vperm.xlu0 %578, %v461
    %v580 = vpop.permute.xlu0 %579
    %583 = vset.pattern.permute.xlu0 0
    %584 = vperm.xlu0 %583, %v462
    %v585 = vpop.permute.xlu0 %584
    %588 = vset.pattern.permute.xlu0 0
    %589 = vperm.xlu0 %588, %v463
    %v590 = vpop.permute.xlu0 %589
    %v592 = vsub.f32 %v384, %v515
    %v593 = vsub.f32 %v385, %v520
    %v594 = vsub.f32 %v386, %v525
    %v595 = vsub.f32 %v387, %v530
    %v596 = vsub.f32 %v388, %v535
    %v597 = vsub.f32 %v389, %v540
    %v598 = vsub.f32 %v390, %v545
    %v599 = vsub.f32 %v391, %v550
    %v600 = vsub.f32 %v392, %v555
    %v601 = vsub.f32 %v393, %v560
    %v602 = vsub.f32 %v394, %v565
    %v603 = vsub.f32 %v395, %v570
    %v604 = vsub.f32 %v396, %v575
    %v605 = vsub.f32 %v397, %v580
    %v606 = vsub.f32 %v398, %v585
    %v607 = vsub.f32 %v399, %v590
    %v608 = vmul.f32 %v592, 1.442695
    %v609 = vpow.pop %v608
    %v610 = vmul.f32 %v593, 1.442695
    %v611 = vpow.pop %v610
    %v612 = vmul.f32 %v594, 1.442695
    %v613 = vpow.pop %v612
    %v614 = vmul.f32 %v595, 1.442695
    %v615 = vpow.pop %v614
    %v616 = vmul.f32 %v596, 1.442695
    %v617 = vpow.pop %v616
    %v618 = vmul.f32 %v597, 1.442695
    %v619 = vpow.pop %v618
    %v620 = vmul.f32 %v598, 1.442695
    %v621 = vpow.pop %v620
    %v622 = vmul.f32 %v599, 1.442695
    %v623 = vpow.pop %v622
    %v624 = vmul.f32 %v600, 1.442695
    %v625 = vpow.pop %v624
    %v626 = vmul.f32 %v601, 1.442695
    %v627 = vpow.pop %v626
    %v628 = vmul.f32 %v602, 1.442695
    %v629 = vpow.pop %v628
    %v630 = vmul.f32 %v603, 1.442695
    %v631 = vpow.pop %v630
    %v632 = vmul.f32 %v604, 1.442695
    %v633 = vpow.pop %v632
    %v634 = vmul.f32 %v605, 1.442695
    %v635 = vpow.pop %v634
    %v636 = vmul.f32 %v606, 1.442695
    %v637 = vpow.pop %v636
    %v638 = vmul.f32 %v607, 1.442695
    %v639 = vpow.pop %v638
    %v640 = vld [vmem:[#allocation3] sm:$0xff]
    %v641 = vld [vmem:[#allocation3 + $0x8] sm:$0xff]
    %v642 = vld [vmem:[#allocation3 + $0x10] sm:$0xff]
    %v643 = vld [vmem:[#allocation3 + $0x18] sm:$0xff]
    %v644 = vld [vmem:[#allocation3 + $0x20] sm:$0xff]
    %v645 = vld [vmem:[#allocation3 + $0x28] sm:$0xff]
    %v646 = vld [vmem:[#allocation3 + $0x30] sm:$0xff]
    %v647 = vld [vmem:[#allocation3 + $0x38] sm:$0xff]
    %v648 = vld [vmem:[#allocation3 + $0x40] sm:$0xff]
    %v649 = vld [vmem:[#allocation3 + $0x48] sm:$0xff]
    %v650 = vld [vmem:[#allocation3 + $0x50] sm:$0xff]
    %v651 = vld [vmem:[#allocation3 + $0x58] sm:$0xff]
    %v652 = vld [vmem:[#allocation3 + $0x60] sm:$0xff]
    %v653 = vld [vmem:[#allocation3 + $0x68] sm:$0xff]
    %v654 = vld [vmem:[#allocation3 + $0x70] sm:$0xff]
    %v655 = vld [vmem:[#allocation3 + $0x78] sm:$0xff]
    %v656 = vmul.f32 %v481, %v640
    %v657 = vmul.f32 %v483, %v641
    %v658 = vmul.f32 %v485, %v642
    %v659 = vmul.f32 %v487, %v643
    %v660 = vmul.f32 %v489, %v644
    %v661 = vmul.f32 %v491, %v645
    %v662 = vmul.f32 %v493, %v646
    %v663 = vmul.f32 %v495, %v647
    %v664 = vmul.f32 %v497, %v648
    %v665 = vmul.f32 %v499, %v649
    %v666 = vmul.f32 %v501, %v650
    %v667 = vmul.f32 %v503, %v651
    %v668 = vmul.f32 %v505, %v652
    %v669 = vmul.f32 %v507, %v653
    %v670 = vmul.f32 %v509, %v654
    %v671 = vmul.f32 %v511, %v655
    %672 = vadd.xlane.f32.xlu0 %v609
    %v673 = vpop.xlane.xlu0 %672
    %674 = vadd.xlane.f32.xlu0 %v611
    %v675 = vpop.xlane.xlu0 %674
    %676 = vadd.xlane.f32.xlu0 %v613
    %v677 = vpop.xlane.xlu0 %676
    %678 = vadd.xlane.f32.xlu0 %v615
    %v679 = vpop.xlane.xlu0 %678
    %680 = vadd.xlane.f32.xlu0 %v617
    %v681 = vpop.xlane.xlu0 %680
    %682 = vadd.xlane.f32.xlu0 %v619
    %v683 = vpop.xlane.xlu0 %682
    %684 = vadd.xlane.f32.xlu0 %v621
    %v685 = vpop.xlane.xlu0 %684
    %686 = vadd.xlane.f32.xlu0 %v623
    %v687 = vpop.xlane.xlu0 %686
    %688 = vadd.xlane.f32.xlu0 %v625
    %v689 = vpop.xlane.xlu0 %688
    %690 = vadd.xlane.f32.xlu0 %v627
    %v691 = vpop.xlane.xlu0 %690
    %692 = vadd.xlane.f32.xlu0 %v629
    %v693 = vpop.xlane.xlu0 %692
    %694 = vadd.xlane.f32.xlu0 %v631
    %v695 = vpop.xlane.xlu0 %694
    %696 = vadd.xlane.f32.xlu0 %v633
    %v697 = vpop.xlane.xlu0 %696
    %698 = vadd.xlane.f32.xlu0 %v635
    %v699 = vpop.xlane.xlu0 %698
    %700 = vadd.xlane.f32.xlu0 %v637
    %v701 = vpop.xlane.xlu0 %700
    %702 = vadd.xlane.f32.xlu0 %v639
    %v703 = vpop.xlane.xlu0 %702
    %v704 = vadd.f32 %v656, %v673
    %v705 = vadd.f32 %v657, %v675
    %v706 = vadd.f32 %v658, %v677
    %v707 = vadd.f32 %v659, %v679
    %v708 = vadd.f32 %v660, %v681
    %v709 = vadd.f32 %v661, %v683
    %v710 = vadd.f32 %v662, %v685
    %v711 = vadd.f32 %v663, %v687
    %v712 = vadd.f32 %v664, %v689
    %v713 = vadd.f32 %v665, %v691
    %v714 = vadd.f32 %v666, %v693
    %v715 = vadd.f32 %v667, %v695
    %v716 = vadd.f32 %v668, %v697
    %v717 = vadd.f32 %v669, %v699
    %v718 = vadd.f32 %v670, %v701
    %v719 = vadd.f32 %v671, %v703
    %vm720 = vcmask 7168
    %721 = vst.msk [vmem:[#allocation3] sm:$0xff] %vm720, %v704
    %722 = vst.msk [vmem:[#allocation3 + $0x8] sm:$0xff] %vm720, %v705
    %723 = vst.msk [vmem:[#allocation3 + $0x10] sm:$0xff] %vm720, %v706
    %724 = vst.msk [vmem:[#allocation3 + $0x18] sm:$0xff] %vm720, %v707
    %725 = vst.msk [vmem:[#allocation3 + $0x20] sm:$0xff] %vm720, %v708
    %726 = vst.msk [vmem:[#allocation3 + $0x28] sm:$0xff] %vm720, %v709
    %727 = vst.msk [vmem:[#allocation3 + $0x30] sm:$0xff] %vm720, %v710
    %728 = vst.msk [vmem:[#allocation3 + $0x38] sm:$0xff] %vm720, %v711
    %729 = vst.msk [vmem:[#allocation3 + $0x40] sm:$0xff] %vm720, %v712
    %730 = vst.msk [vmem:[#allocation3 + $0x48] sm:$0xff] %vm720, %v713
    %731 = vst.msk [vmem:[#allocation3 + $0x50] sm:$0xff] %vm720, %v714
    %732 = vst.msk [vmem:[#allocation3 + $0x58] sm:$0xff] %vm720, %v715
    %733 = vst.msk [vmem:[#allocation3 + $0x60] sm:$0xff] %vm720, %v716
    %734 = vst.msk [vmem:[#allocation3 + $0x68] sm:$0xff] %vm720, %v717
    %735 = vst.msk [vmem:[#allocation3 + $0x70] sm:$0xff] %vm720, %v718
    %736 = vst.msk [vmem:[#allocation3 + $0x78] sm:$0xff] %vm720, %v719
    %v737 = vld [vmem:[#allocation4] sm:$0xff]
    %v738 = vld [vmem:[#allocation4 + $0x8] sm:$0xff]
    %v739 = vld [vmem:[#allocation4 + $0x10] sm:$0xff]
    %v740 = vld [vmem:[#allocation4 + $0x18] sm:$0xff]
    %v741 = vld [vmem:[#allocation4 + $0x20] sm:$0xff]
    %v742 = vld [vmem:[#allocation4 + $0x28] sm:$0xff]
    %v743 = vld [vmem:[#allocation4 + $0x30] sm:$0xff]
    %v744 = vld [vmem:[#allocation4 + $0x38] sm:$0xff]
    %v745 = vld [vmem:[#allocation4 + $0x40] sm:$0xff]
    %v746 = vld [vmem:[#allocation4 + $0x48] sm:$0xff]
    %v747 = vld [vmem:[#allocation4 + $0x50] sm:$0xff]
    %v748 = vld [vmem:[#allocation4 + $0x58] sm:$0xff]
    %v749 = vld [vmem:[#allocation4 + $0x60] sm:$0xff]
    %v750 = vld [vmem:[#allocation4 + $0x68] sm:$0xff]
    %v751 = vld [vmem:[#allocation4 + $0x70] sm:$0xff]
    %v752 = vld [vmem:[#allocation4 + $0x78] sm:$0xff]
    %754 = vset.pattern.permute.xlu0 0
    %755 = vperm.xlu0 %754, %v481
    %v756 = vpop.permute.xlu0 %755
    %759 = vset.pattern.permute.xlu0 0
    %760 = vperm.xlu0 %759, %v483
    %v761 = vpop.permute.xlu0 %760
    %764 = vset.pattern.permute.xlu0 0
    %765 = vperm.xlu0 %764, %v485
    %v766 = vpop.permute.xlu0 %765
    %769 = vset.pattern.permute.xlu0 0
    %770 = vperm.xlu0 %769, %v487
    %v771 = vpop.permute.xlu0 %770
    %774 = vset.pattern.permute.xlu0 0
    %775 = vperm.xlu0 %774, %v489
    %v776 = vpop.permute.xlu0 %775
    %779 = vset.pattern.permute.xlu0 0
    %780 = vperm.xlu0 %779, %v491
    %v781 = vpop.permute.xlu0 %780
    %784 = vset.pattern.permute.xlu0 0
    %785 = vperm.xlu0 %784, %v493
    %v786 = vpop.permute.xlu0 %785
    %789 = vset.pattern.permute.xlu0 0
    %790 = vperm.xlu0 %789, %v495
    %v791 = vpop.permute.xlu0 %790
    %794 = vset.pattern.permute.xlu0 0
    %795 = vperm.xlu0 %794, %v497
    %v796 = vpop.permute.xlu0 %795
    %799 = vset.pattern.permute.xlu0 0
    %800 = vperm.xlu0 %799, %v499
    %v801 = vpop.permute.xlu0 %800
    %804 = vset.pattern.permute.xlu0 0
    %805 = vperm.xlu0 %804, %v501
    %v806 = vpop.permute.xlu0 %805
    %809 = vset.pattern.permute.xlu0 0
    %810 = vperm.xlu0 %809, %v503
    %v811 = vpop.permute.xlu0 %810
    %814 = vset.pattern.permute.xlu0 0
    %815 = vperm.xlu0 %814, %v505
    %v816 = vpop.permute.xlu0 %815
    %819 = vset.pattern.permute.xlu0 0
    %820 = vperm.xlu0 %819, %v507
    %v821 = vpop.permute.xlu0 %820
    %824 = vset.pattern.permute.xlu0 0
    %825 = vperm.xlu0 %824, %v509
    %v826 = vpop.permute.xlu0 %825
    %829 = vset.pattern.permute.xlu0 0
    %830 = vperm.xlu0 %829, %v511
    %v831 = vpop.permute.xlu0 %830
    %v833 = vmul.f32 %v756, %v737
    %v834 = vmul.f32 %v761, %v738
    %v835 = vmul.f32 %v766, %v739
    %v836 = vmul.f32 %v771, %v740
    %v837 = vmul.f32 %v776, %v741
    %v838 = vmul.f32 %v781, %v742
    %v839 = vmul.f32 %v786, %v743
    %v840 = vmul.f32 %v791, %v744
    %v841 = vmul.f32 %v796, %v745
    %v842 = vmul.f32 %v801, %v746
    %v843 = vmul.f32 %v806, %v747
    %v844 = vmul.f32 %v811, %v748
    %v845 = vmul.f32 %v816, %v749
    %v846 = vmul.f32 %v821, %v750
    %v847 = vmul.f32 %v826, %v751
    %v848 = vmul.f32 %v831, %v752
    %v849 = vpack.c.bf16 %v611, %v609
    %v850 = vpack.c.bf16 %v615, %v613
    %v851 = vpack.c.bf16 %v619, %v617
    %v852 = vpack.c.bf16 %v623, %v621
    %v853 = vpack.c.bf16 %v627, %v625
    %v854 = vpack.c.bf16 %v631, %v629
    %v855 = vpack.c.bf16 %v635, %v633
    %v856 = vpack.c.bf16 %v639, %v637
    %v857 = vld [vmem:[%s3] sm:$0xf]
    %v858 = vld [vmem:[%s3 + $0x4] sm:$0xf]
    %v859 = vld [vmem:[%s3 + $0x8] sm:$0xf]
    %v860 = vld [vmem:[%s3 + $0xc] sm:$0xf]
    %v861 = vld [vmem:[%s3 + $0x10] sm:$0xf]
    %v862 = vld [vmem:[%s3 + $0x14] sm:$0xf]
    %v863 = vld [vmem:[%s3 + $0x18] sm:$0xf]
    %v864 = vld [vmem:[%s3 + $0x1c] sm:$0xf]
    %v865 = vld [vmem:[%s3 + $0x20] sm:$0xf]
    %v866 = vld [vmem:[%s3 + $0x24] sm:$0xf]
    %v867 = vld [vmem:[%s3 + $0x28] sm:$0xf]
    %v868 = vld [vmem:[%s3 + $0x2c] sm:$0xf]
    %v869 = vld [vmem:[%s3 + $0x30] sm:$0xf]
    %v870 = vld [vmem:[%s3 + $0x34] sm:$0xf]
    %v871 = vld [vmem:[%s3 + $0x38] sm:$0xf]
    %v872 = vld [vmem:[%s3 + $0x3c] sm:$0xf]
    %v889 = vunpack.c.l.b16 %v857
    %v890 = vunpack.c.l.b16 %v858
    %v891 = vunpack.c.l.b16 %v859
    %v892 = vunpack.c.l.b16 %v860
    %v893 = vunpack.c.l.b16 %v861
    %v894 = vunpack.c.l.b16 %v862
    %v895 = vunpack.c.l.b16 %v863
    %v896 = vunpack.c.l.b16 %v864
    %v897 = vunpack.c.l.b16 %v865
    %v898 = vunpack.c.l.b16 %v866
    %v899 = vunpack.c.l.b16 %v867
    %v900 = vunpack.c.l.b16 %v868
    %v901 = vunpack.c.l.b16 %v869
    %v902 = vunpack.c.l.b16 %v870
    %v903 = vunpack.c.l.b16 %v871
    %v904 = vunpack.c.l.b16 %v872
    %v905 = vpack.c.b16 %v890, %v889
    %v906 = vpack.c.b16 %v892, %v891
    %v907 = vpack.c.b16 %v894, %v893
    %v908 = vpack.c.b16 %v896, %v895
    %v909 = vpack.c.b16 %v898, %v897
    %v910 = vpack.c.b16 %v900, %v899
    %v911 = vpack.c.b16 %v902, %v901
    %v912 = vpack.c.b16 %v904, %v903
    %921 = vmatprep.subr.bf16.mxu0 0
    %922 = vmatpush1.bf16.msra.mxu0 %v912
    %923 = vmatprep.subr.bf16.mxu0 0
    %924 = vmatpush1.bf16.msra.mxu0 %v911
    %925 = vmatprep.subr.bf16.mxu0 0
    %926 = vmatpush1.bf16.msra.mxu0 %v910
    %927 = vmatprep.subr.bf16.mxu0 0
    %928 = vmatpush1.bf16.msra.mxu0 %v909
    %929 = vmatprep.subr.bf16.mxu0 0
    %930 = vmatpush1.bf16.msra.mxu0 %v908
    %931 = vmatprep.subr.bf16.mxu0 0
    %932 = vmatpush1.bf16.msra.mxu0 %v907
    %933 = vmatprep.subr.bf16.mxu0 0
    %934 = vmatpush1.bf16.msra.mxu0 %v906
    %935 = vmatprep.subr.bf16.mxu0 0
    %936 = vmatpush1.bf16.msra.mxu0 %v905
    %937 = vmatprep.subr.bf16.mxu0 0
    %938 = vmatpush2.bf16.msra.mxu0 0
    %939 = vmatprep.subr.bf16.mxu0 0
    %940 = vmatpush2.bf16.msra.mxu0 0
    %941 = vmatprep.subr.bf16.mxu0 0
    %942 = vmatpush2.bf16.msra.mxu0 0
    %943 = vmatprep.subr.bf16.mxu0 0
    %944 = vmatpush2.bf16.msra.mxu0 0
    %945 = vmatprep.subr.bf16.mxu0 0
    %946 = vmatpush2.bf16.msra.mxu0 0
    %947 = vmatprep.subr.bf16.mxu0 0
    %948 = vmatpush2.bf16.msra.mxu0 0
    %949 = vmatprep.subr.bf16.mxu0 0
    %950 = vmatpush2.bf16.msra.mxu0 0
    %951 = vmatprep.subr.bf16.mxu0 0
    %952 = vmatpush2.bf16.msra.mxu0 0
    %953 = vmatprep.mubr.bf16.mxu0 0
    %954 = vmatmul.mubr.bf16.gmra.mxu0 %v849
    %v955 = vpop.f32.mrf.mxu0
    %v956 = vadd.f32 0.0, %v955
    %v957 = vpop.f32.mrf.mxu0
    %v958 = vpop.f32.mrf.mxu0
    %v959 = vadd.f32 0.0, %v958
    %v960 = vpop.f32.mrf.mxu0
    %961 = vmatprep.mubr.bf16.mxu0 0
    %962 = vmatmul.mubr.bf16.gmra.mxu0 %v850
    %v963 = vpop.f32.mrf.mxu0
    %v964 = vadd.f32 0.0, %v963
    %v965 = vpop.f32.mrf.mxu0
    %v966 = vpop.f32.mrf.mxu0
    %v967 = vadd.f32 0.0, %v966
    %v968 = vpop.f32.mrf.mxu0
    %969 = vmatprep.mubr.bf16.mxu0 0
    %970 = vmatmul.mubr.bf16.gmra.mxu0 %v851
    %v971 = vpop.f32.mrf.mxu0
    %v972 = vadd.f32 0.0, %v971
    %v973 = vpop.f32.mrf.mxu0
    %v974 = vpop.f32.mrf.mxu0
    %v975 = vadd.f32 0.0, %v974
    %v976 = vpop.f32.mrf.mxu0
    %977 = vmatprep.mubr.bf16.mxu0 0
    %978 = vmatmul.mubr.bf16.gmra.mxu0 %v852
    %v979 = vpop.f32.mrf.mxu0
    %v980 = vadd.f32 0.0, %v979
    %v981 = vpop.f32.mrf.mxu0
    %v982 = vpop.f32.mrf.mxu0
    %v983 = vadd.f32 0.0, %v982
    %v984 = vpop.f32.mrf.mxu0
    %985 = vmatprep.mubr.bf16.mxu0 0
    %986 = vmatmul.mubr.bf16.gmra.mxu0 %v853
    %v987 = vpop.f32.mrf.mxu0
    %v988 = vadd.f32 0.0, %v987
    %v989 = vpop.f32.mrf.mxu0
    %v990 = vpop.f32.mrf.mxu0
    %v991 = vadd.f32 0.0, %v990
    %v992 = vpop.f32.mrf.mxu0
    %993 = vmatprep.mubr.bf16.mxu0 0
    %994 = vmatmul.mubr.bf16.gmra.mxu0 %v854
    %v995 = vpop.f32.mrf.mxu0
    %v996 = vadd.f32 0.0, %v995
    %v997 = vpop.f32.mrf.mxu0
    %v998 = vpop.f32.mrf.mxu0
    %v999 = vadd.f32 0.0, %v998
    %v1000 = vpop.f32.mrf.mxu0
    %1001 = vmatprep.mubr.bf16.mxu0 0
    %1002 = vmatmul.mubr.bf16.gmra.mxu0 %v855
    %v1003 = vpop.f32.mrf.mxu0
    %v1004 = vadd.f32 0.0, %v1003
    %v1005 = vpop.f32.mrf.mxu0
    %v1006 = vpop.f32.mrf.mxu0
    %v1007 = vadd.f32 0.0, %v1006
    %v1008 = vpop.f32.mrf.mxu0
    %1009 = vmatprep.mubr.bf16.mxu0 0
    %1010 = vmatmul.mubr.bf16.gmra.mxu0 %v856
    %v1011 = vpop.f32.mrf.mxu0
    %v1012 = vadd.f32 0.0, %v1011
    %v1013 = vpop.f32.mrf.mxu0
    %v1014 = vpop.f32.mrf.mxu0
    %v1015 = vadd.f32 0.0, %v1014
    %v1016 = vpop.f32.mrf.mxu0
    %1017 = vdwg.mxu0
    %v1018 = vadd.f32 %v833, %v956
    %v1019 = vadd.f32 %v834, %v959
    %v1020 = vadd.f32 %v835, %v964
    %v1021 = vadd.f32 %v836, %v967
    %v1022 = vadd.f32 %v837, %v972
    %v1023 = vadd.f32 %v838, %v975
    %v1024 = vadd.f32 %v839, %v980
    %v1025 = vadd.f32 %v840, %v983
    %v1026 = vadd.f32 %v841, %v988
    %v1027 = vadd.f32 %v842, %v991
    %v1028 = vadd.f32 %v843, %v996
    %v1029 = vadd.f32 %v844, %v999
    %v1030 = vadd.f32 %v845, %v1004
    %v1031 = vadd.f32 %v846, %v1007
    %v1032 = vadd.f32 %v847, %v1012
    %v1033 = vadd.f32 %v848, %v1015
    %1034 = vst [vmem:[#allocation4] sm:$0xff] %v1018
    %1035 = vst [vmem:[#allocation4 + $0x8] sm:$0xff] %v1019
    %1036 = vst [vmem:[#allocation4 + $0x10] sm:$0xff] %v1020
    %1037 = vst [vmem:[#allocation4 + $0x18] sm:$0xff] %v1021
    %1038 = vst [vmem:[#allocation4 + $0x20] sm:$0xff] %v1022
    %1039 = vst [vmem:[#allocation4 + $0x28] sm:$0xff] %v1023
    %1040 = vst [vmem:[#allocation4 + $0x30] sm:$0xff] %v1024
    %1041 = vst [vmem:[#allocation4 + $0x38] sm:$0xff] %v1025
    %1042 = vst [vmem:[#allocation4 + $0x40] sm:$0xff] %v1026
    %1043 = vst [vmem:[#allocation4 + $0x48] sm:$0xff] %v1027
    %1044 = vst [vmem:[#allocation4 + $0x50] sm:$0xff] %v1028
    %1045 = vst [vmem:[#allocation4 + $0x58] sm:$0xff] %v1029
    %1046 = vst [vmem:[#allocation4 + $0x60] sm:$0xff] %v1030
    %1047 = vst [vmem:[#allocation4 + $0x68] sm:$0xff] %v1031
    %1048 = vst [vmem:[#allocation4 + $0x70] sm:$0xff] %v1032
    %1049 = vst [vmem:[#allocation4 + $0x78] sm:$0xff] %v1033
    %1050 = vst.msk [vmem:[#allocation2] sm:$0xff] %vm720, %v448
    %1051 = vst.msk [vmem:[#allocation2 + $0x8] sm:$0xff] %vm720, %v449
    %1052 = vst.msk [vmem:[#allocation2 + $0x10] sm:$0xff] %vm720, %v450
    %1053 = vst.msk [vmem:[#allocation2 + $0x18] sm:$0xff] %vm720, %v451
    %1054 = vst.msk [vmem:[#allocation2 + $0x20] sm:$0xff] %vm720, %v452
    %1055 = vst.msk [vmem:[#allocation2 + $0x28] sm:$0xff] %vm720, %v453
    %1056 = vst.msk [vmem:[#allocation2 + $0x30] sm:$0xff] %vm720, %v454
    %1057 = vst.msk [vmem:[#allocation2 + $0x38] sm:$0xff] %vm720, %v455
    %1058 = vst.msk [vmem:[#allocation2 + $0x40] sm:$0xff] %vm720, %v456
    %1059 = vst.msk [vmem:[#allocation2 + $0x48] sm:$0xff] %vm720, %v457
    %1060 = vst.msk [vmem:[#allocation2 + $0x50] sm:$0xff] %vm720, %v458
    %1061 = vst.msk [vmem:[#allocation2 + $0x58] sm:$0xff] %vm720, %v459
    %1062 = vst.msk [vmem:[#allocation2 + $0x60] sm:$0xff] %vm720, %v460
    %1063 = vst.msk [vmem:[#allocation2 + $0x68] sm:$0xff] %vm720, %v461
    %1064 = vst.msk [vmem:[#allocation2 + $0x70] sm:$0xff] %vm720, %v462
    %1065 = vst.msk [vmem:[#allocation2 + $0x78] sm:$0xff] %vm720, %v463
    %1066 = vset.pattern.permute.xlu0 1
    %1067 = vperm.xlu0 %1066, %v171
    %v1068 = vpop.permute.xlu0 %1067
    %1070 = vset.pattern.permute.xlu0 1
    %1071 = vperm.xlu0 %1070, %v172
    %v1072 = vpop.permute.xlu0 %1071
    %1074 = vset.pattern.permute.xlu0 1
    %1075 = vperm.xlu0 %1074, %v173
    %v1076 = vpop.permute.xlu0 %1075
    %1078 = vset.pattern.permute.xlu0 1
    %1079 = vperm.xlu0 %1078, %v174
    %v1080 = vpop.permute.xlu0 %1079
    %1082 = vset.pattern.permute.xlu0 1
    %1083 = vperm.xlu0 %1082, %v175
    %v1084 = vpop.permute.xlu0 %1083
    %1086 = vset.pattern.permute.xlu0 1
    %1087 = vperm.xlu0 %1086, %v176
    %v1088 = vpop.permute.xlu0 %1087
    %1090 = vset.pattern.permute.xlu0 1
    %1091 = vperm.xlu0 %1090, %v177
    %v1092 = vpop.permute.xlu0 %1091
    %1094 = vset.pattern.permute.xlu0 1
    %1095 = vperm.xlu0 %1094, %v178
    %v1096 = vpop.permute.xlu0 %1095
    %1098 = vset.pattern.permute.xlu0 1
    %1099 = vperm.xlu0 %1098, %v179
    %v1100 = vpop.permute.xlu0 %1099
    %1102 = vset.pattern.permute.xlu0 1
    %1103 = vperm.xlu0 %1102, %v180
    %v1104 = vpop.permute.xlu0 %1103
    %1106 = vset.pattern.permute.xlu0 1
    %1107 = vperm.xlu0 %1106, %v181
    %v1108 = vpop.permute.xlu0 %1107
    %1110 = vset.pattern.permute.xlu0 1
    %1111 = vperm.xlu0 %1110, %v182
    %v1112 = vpop.permute.xlu0 %1111
    %1114 = vset.pattern.permute.xlu0 1
    %1115 = vperm.xlu0 %1114, %v183
    %v1116 = vpop.permute.xlu0 %1115
    %1118 = vset.pattern.permute.xlu0 1
    %1119 = vperm.xlu0 %1118, %v184
    %v1120 = vpop.permute.xlu0 %1119
    %1122 = vset.pattern.permute.xlu0 1
    %1123 = vperm.xlu0 %1122, %v185
    %v1124 = vpop.permute.xlu0 %1123
    %1126 = vset.pattern.permute.xlu0 1
    %1127 = vperm.xlu0 %1126, %v186
    %v1128 = vpop.permute.xlu0 %1127
    %v1130 = vlaneseq
    %v1131 = vshrl.u32 %v1130, 7
    %v1132 = vsub.s32 1, %v1131
    %v1133 = vrot.slane %v187, %v1132
    %v1134 = vadd.f32 %v1068, %v1133
    %v1135 = vadd.f32 %v1072, %v1133
    %v1136 = vadd.f32 %v1076, %v1133
    %v1137 = vadd.f32 %v1080, %v1133
    %v1138 = vadd.f32 %v1084, %v1133
    %v1139 = vadd.f32 %v1088, %v1133
    %v1140 = vadd.f32 %v1092, %v1133
    %v1141 = vadd.f32 %v1096, %v1133
    %v1142 = vadd.f32 %v1100, %v1133
    %v1143 = vadd.f32 %v1104, %v1133
    %v1144 = vadd.f32 %v1108, %v1133
    %v1145 = vadd.f32 %v1112, %v1133
    %v1146 = vadd.f32 %v1116, %v1133
    %v1147 = vadd.f32 %v1120, %v1133
    %v1148 = vadd.f32 %v1124, %v1133
    %v1149 = vadd.f32 %v1128, %v1133
    %vm1150 = vcmp.gt.f32.partialorder %v1134, 0.0
    %vm1151 = vcmp.gt.f32.partialorder %v1135, 0.0
    %vm1152 = vcmp.gt.f32.partialorder %v1136, 0.0
    %vm1153 = vcmp.gt.f32.partialorder %v1137, 0.0
    %vm1154 = vcmp.gt.f32.partialorder %v1138, 0.0
    %vm1155 = vcmp.gt.f32.partialorder %v1139, 0.0
    %vm1156 = vcmp.gt.f32.partialorder %v1140, 0.0
    %vm1157 = vcmp.gt.f32.partialorder %v1141, 0.0
    %vm1158 = vcmp.gt.f32.partialorder %v1142, 0.0
    %vm1159 = vcmp.gt.f32.partialorder %v1143, 0.0
    %vm1160 = vcmp.gt.f32.partialorder %v1144, 0.0
    %vm1161 = vcmp.gt.f32.partialorder %v1145, 0.0
    %vm1162 = vcmp.gt.f32.partialorder %v1146, 0.0
    %vm1163 = vcmp.gt.f32.partialorder %v1147, 0.0
    %vm1164 = vcmp.gt.f32.partialorder %v1148, 0.0
    %vm1165 = vcmp.gt.f32.partialorder %v1149, 0.0
    %v1166 = vmul.f32 %v1134, 0.2
    %v1167 = vmul.f32 %v1135, 0.2
    %v1168 = vmul.f32 %v1136, 0.2
    %v1169 = vmul.f32 %v1137, 0.2
    %v1170 = vmul.f32 %v1138, 0.2
    %v1171 = vmul.f32 %v1139, 0.2
    %v1172 = vmul.f32 %v1140, 0.2
    %v1173 = vmul.f32 %v1141, 0.2
    %v1174 = vmul.f32 %v1142, 0.2
    %v1175 = vmul.f32 %v1143, 0.2
    %v1176 = vmul.f32 %v1144, 0.2
    %v1177 = vmul.f32 %v1145, 0.2
    %v1178 = vmul.f32 %v1146, 0.2
    %v1179 = vmul.f32 %v1147, 0.2
    %v1180 = vmul.f32 %v1148, 0.2
    %v1181 = vmul.f32 %v1149, 0.2
    %v1182 = vsel %vm1150, %v1134, %v1166
    %v1183 = vsel %vm1151, %v1135, %v1167
    %v1184 = vsel %vm1152, %v1136, %v1168
    %v1185 = vsel %vm1153, %v1137, %v1169
    %v1186 = vsel %vm1154, %v1138, %v1170
    %v1187 = vsel %vm1155, %v1139, %v1171
    %v1188 = vsel %vm1156, %v1140, %v1172
    %v1189 = vsel %vm1157, %v1141, %v1173
    %v1190 = vsel %vm1158, %v1142, %v1174
    %v1191 = vsel %vm1159, %v1143, %v1175
    %v1192 = vsel %vm1160, %v1144, %v1176
    %v1193 = vsel %vm1161, %v1145, %v1177
    %v1194 = vsel %vm1162, %v1146, %v1178
    %v1195 = vsel %vm1163, %v1147, %v1179
    %v1196 = vsel %vm1164, %v1148, %v1180
    %v1197 = vsel %vm1165, %v1149, %v1181
    %v1198 = vsel %vm368, %v1182, -1e+30
    %v1199 = vsel %vm369, %v1183, -1e+30
    %v1200 = vsel %vm370, %v1184, -1e+30
    %v1201 = vsel %vm371, %v1185, -1e+30
    %v1202 = vsel %vm372, %v1186, -1e+30
    %v1203 = vsel %vm373, %v1187, -1e+30
    %v1204 = vsel %vm374, %v1188, -1e+30
    %v1205 = vsel %vm375, %v1189, -1e+30
    %v1206 = vsel %vm376, %v1190, -1e+30
    %v1207 = vsel %vm377, %v1191, -1e+30
    %v1208 = vsel %vm378, %v1192, -1e+30
    %v1209 = vsel %vm379, %v1193, -1e+30
    %v1210 = vsel %vm380, %v1194, -1e+30
    %v1211 = vsel %vm381, %v1195, -1e+30
    %v1212 = vsel %vm382, %v1196, -1e+30
    %v1213 = vsel %vm383, %v1197, -1e+30
    %s1214 = scalar_lea.vmem [#allocation2], 128
    %v1215 = vld [vmem:[%s1214] sm:$0xff]
    %v1216 = vld [vmem:[%s1214 + $0x8] sm:$0xff]
    %v1217 = vld [vmem:[%s1214 + $0x10] sm:$0xff]
    %v1218 = vld [vmem:[%s1214 + $0x18] sm:$0xff]
    %v1219 = vld [vmem:[%s1214 + $0x20] sm:$0xff]
    %v1220 = vld [vmem:[%s1214 + $0x28] sm:$0xff]
    %v1221 = vld [vmem:[%s1214 + $0x30] sm:$0xff]
    %v1222 = vld [vmem:[%s1214 + $0x38] sm:$0xff]
    %v1223 = vld [vmem:[%s1214 + $0x40] sm:$0xff]
    %v1224 = vld [vmem:[%s1214 + $0x48] sm:$0xff]
    %v1225 = vld [vmem:[%s1214 + $0x50] sm:$0xff]
    %v1226 = vld [vmem:[%s1214 + $0x58] sm:$0xff]
    %v1227 = vld [vmem:[%s1214 + $0x60] sm:$0xff]
    %v1228 = vld [vmem:[%s1214 + $0x68] sm:$0xff]
    %v1229 = vld [vmem:[%s1214 + $0x70] sm:$0xff]
    %v1230 = vld [vmem:[%s1214 + $0x78] sm:$0xff]
    %1231 = vmax.xlane.f32.xlu0 %v1198
    %v1232 = vpop.xlane.xlu0 %1231
    %1233 = vmax.xlane.f32.xlu0 %v1199
    %v1234 = vpop.xlane.xlu0 %1233
    %1235 = vmax.xlane.f32.xlu0 %v1200
    %v1236 = vpop.xlane.xlu0 %1235
    %1237 = vmax.xlane.f32.xlu0 %v1201
    %v1238 = vpop.xlane.xlu0 %1237
    %1239 = vmax.xlane.f32.xlu0 %v1202
    %v1240 = vpop.xlane.xlu0 %1239
    %1241 = vmax.xlane.f32.xlu0 %v1203
    %v1242 = vpop.xlane.xlu0 %1241
    %1243 = vmax.xlane.f32.xlu0 %v1204
    %v1244 = vpop.xlane.xlu0 %1243
    %1245 = vmax.xlane.f32.xlu0 %v1205
    %v1246 = vpop.xlane.xlu0 %1245
    %1247 = vmax.xlane.f32.xlu0 %v1206
    %v1248 = vpop.xlane.xlu0 %1247
    %1249 = vmax.xlane.f32.xlu0 %v1207
    %v1250 = vpop.xlane.xlu0 %1249
    %1251 = vmax.xlane.f32.xlu0 %v1208
    %v1252 = vpop.xlane.xlu0 %1251
    %1253 = vmax.xlane.f32.xlu0 %v1209
    %v1254 = vpop.xlane.xlu0 %1253
    %1255 = vmax.xlane.f32.xlu0 %v1210
    %v1256 = vpop.xlane.xlu0 %1255
    %1257 = vmax.xlane.f32.xlu0 %v1211
    %v1258 = vpop.xlane.xlu0 %1257
    %1259 = vmax.xlane.f32.xlu0 %v1212
    %v1260 = vpop.xlane.xlu0 %1259
    %1261 = vmax.xlane.f32.xlu0 %v1213
    %v1262 = vpop.xlane.xlu0 %1261
    %v1263 = vmax.f32 %v1215, %v1232
    %v1264 = vmax.f32 %v1216, %v1234
    %v1265 = vmax.f32 %v1217, %v1236
    %v1266 = vmax.f32 %v1218, %v1238
    %v1267 = vmax.f32 %v1219, %v1240
    %v1268 = vmax.f32 %v1220, %v1242
    %v1269 = vmax.f32 %v1221, %v1244
    %v1270 = vmax.f32 %v1222, %v1246
    %v1271 = vmax.f32 %v1223, %v1248
    %v1272 = vmax.f32 %v1224, %v1250
    %v1273 = vmax.f32 %v1225, %v1252
    %v1274 = vmax.f32 %v1226, %v1254
    %v1275 = vmax.f32 %v1227, %v1256
    %v1276 = vmax.f32 %v1228, %v1258
    %v1277 = vmax.f32 %v1229, %v1260
    %v1278 = vmax.f32 %v1230, %v1262
    %v1279 = vsub.f32 %v1215, %v1263
    %v1280 = vsub.f32 %v1216, %v1264
    %v1281 = vsub.f32 %v1217, %v1265
    %v1282 = vsub.f32 %v1218, %v1266
    %v1283 = vsub.f32 %v1219, %v1267
    %v1284 = vsub.f32 %v1220, %v1268
    %v1285 = vsub.f32 %v1221, %v1269
    %v1286 = vsub.f32 %v1222, %v1270
    %v1287 = vsub.f32 %v1223, %v1271
    %v1288 = vsub.f32 %v1224, %v1272
    %v1289 = vsub.f32 %v1225, %v1273
    %v1290 = vsub.f32 %v1226, %v1274
    %v1291 = vsub.f32 %v1227, %v1275
    %v1292 = vsub.f32 %v1228, %v1276
    %v1293 = vsub.f32 %v1229, %v1277
    %v1294 = vsub.f32 %v1230, %v1278
    %v1295 = vmul.f32 %v1279, 1.442695
    %v1296 = vpow.pop %v1295
    %v1297 = vmul.f32 %v1280, 1.442695
    %v1298 = vpow.pop %v1297
    %v1299 = vmul.f32 %v1281, 1.442695
    %v1300 = vpow.pop %v1299
    %v1301 = vmul.f32 %v1282, 1.442695
    %v1302 = vpow.pop %v1301
    %v1303 = vmul.f32 %v1283, 1.442695
    %v1304 = vpow.pop %v1303
    %v1305 = vmul.f32 %v1284, 1.442695
    %v1306 = vpow.pop %v1305
    %v1307 = vmul.f32 %v1285, 1.442695
    %v1308 = vpow.pop %v1307
    %v1309 = vmul.f32 %v1286, 1.442695
    %v1310 = vpow.pop %v1309
    %v1311 = vmul.f32 %v1287, 1.442695
    %v1312 = vpow.pop %v1311
    %v1313 = vmul.f32 %v1288, 1.442695
    %v1314 = vpow.pop %v1313
    %v1315 = vmul.f32 %v1289, 1.442695
    %v1316 = vpow.pop %v1315
    %v1317 = vmul.f32 %v1290, 1.442695
    %v1318 = vpow.pop %v1317
    %v1319 = vmul.f32 %v1291, 1.442695
    %v1320 = vpow.pop %v1319
    %v1321 = vmul.f32 %v1292, 1.442695
    %v1322 = vpow.pop %v1321
    %v1323 = vmul.f32 %v1293, 1.442695
    %v1324 = vpow.pop %v1323
    %v1325 = vmul.f32 %v1294, 1.442695
    %v1326 = vpow.pop %v1325
    %1328 = vset.pattern.permute.xlu0 0
    %1329 = vperm.xlu0 %1328, %v1263
    %v1330 = vpop.permute.xlu0 %1329
    %1333 = vset.pattern.permute.xlu0 0
    %1334 = vperm.xlu0 %1333, %v1264
    %v1335 = vpop.permute.xlu0 %1334
    %1338 = vset.pattern.permute.xlu0 0
    %1339 = vperm.xlu0 %1338, %v1265
    %v1340 = vpop.permute.xlu0 %1339
    %1343 = vset.pattern.permute.xlu0 0
    %1344 = vperm.xlu0 %1343, %v1266
    %v1345 = vpop.permute.xlu0 %1344
    %1348 = vset.pattern.permute.xlu0 0
    %1349 = vperm.xlu0 %1348, %v1267
    %v1350 = vpop.permute.xlu0 %1349
    %1353 = vset.pattern.permute.xlu0 0
    %1354 = vperm.xlu0 %1353, %v1268
    %v1355 = vpop.permute.xlu0 %1354
    %1358 = vset.pattern.permute.xlu0 0
    %1359 = vperm.xlu0 %1358, %v1269
    %v1360 = vpop.permute.xlu0 %1359
    %1363 = vset.pattern.permute.xlu0 0
    %1364 = vperm.xlu0 %1363, %v1270
    %v1365 = vpop.permute.xlu0 %1364
    %1368 = vset.pattern.permute.xlu0 0
    %1369 = vperm.xlu0 %1368, %v1271
    %v1370 = vpop.permute.xlu0 %1369
    %1373 = vset.pattern.permute.xlu0 0
    %1374 = vperm.xlu0 %1373, %v1272
    %v1375 = vpop.permute.xlu0 %1374
    %1378 = vset.pattern.permute.xlu0 0
    %1379 = vperm.xlu0 %1378, %v1273
    %v1380 = vpop.permute.xlu0 %1379
    %1383 = vset.pattern.permute.xlu0 0
    %1384 = vperm.xlu0 %1383, %v1274
    %v1385 = vpop.permute.xlu0 %1384
    %1388 = vset.pattern.permute.xlu0 0
    %1389 = vperm.xlu0 %1388, %v1275
    %v1390 = vpop.permute.xlu0 %1389
    %1393 = vset.pattern.permute.xlu0 0
    %1394 = vperm.xlu0 %1393, %v1276
    %v1395 = vpop.permute.xlu0 %1394
    %1398 = vset.pattern.permute.xlu0 0
    %1399 = vperm.xlu0 %1398, %v1277
    %v1400 = vpop.permute.xlu0 %1399
    %1403 = vset.pattern.permute.xlu0 0
    %1404 = vperm.xlu0 %1403, %v1278
    %v1405 = vpop.permute.xlu0 %1404
    %v1407 = vsub.f32 %v1198, %v1330
    %v1408 = vsub.f32 %v1199, %v1335
    %v1409 = vsub.f32 %v1200, %v1340
    %v1410 = vsub.f32 %v1201, %v1345
    %v1411 = vsub.f32 %v1202, %v1350
    %v1412 = vsub.f32 %v1203, %v1355
    %v1413 = vsub.f32 %v1204, %v1360
    %v1414 = vsub.f32 %v1205, %v1365
    %v1415 = vsub.f32 %v1206, %v1370
    %v1416 = vsub.f32 %v1207, %v1375
    %v1417 = vsub.f32 %v1208, %v1380
    %v1418 = vsub.f32 %v1209, %v1385
    %v1419 = vsub.f32 %v1210, %v1390
    %v1420 = vsub.f32 %v1211, %v1395
    %v1421 = vsub.f32 %v1212, %v1400
    %v1422 = vsub.f32 %v1213, %v1405
    %v1423 = vmul.f32 %v1407, 1.442695
    %v1424 = vpow.pop %v1423
    %v1425 = vmul.f32 %v1408, 1.442695
    %v1426 = vpow.pop %v1425
    %v1427 = vmul.f32 %v1409, 1.442695
    %v1428 = vpow.pop %v1427
    %v1429 = vmul.f32 %v1410, 1.442695
    %v1430 = vpow.pop %v1429
    %v1431 = vmul.f32 %v1411, 1.442695
    %v1432 = vpow.pop %v1431
    %v1433 = vmul.f32 %v1412, 1.442695
    %v1434 = vpow.pop %v1433
    %v1435 = vmul.f32 %v1413, 1.442695
    %v1436 = vpow.pop %v1435
    %v1437 = vmul.f32 %v1414, 1.442695
    %v1438 = vpow.pop %v1437
    %v1439 = vmul.f32 %v1415, 1.442695
    %v1440 = vpow.pop %v1439
    %v1441 = vmul.f32 %v1416, 1.442695
    %v1442 = vpow.pop %v1441
    %v1443 = vmul.f32 %v1417, 1.442695
    %v1444 = vpow.pop %v1443
    %v1445 = vmul.f32 %v1418, 1.442695
    %v1446 = vpow.pop %v1445
    %v1447 = vmul.f32 %v1419, 1.442695
    %v1448 = vpow.pop %v1447
    %v1449 = vmul.f32 %v1420, 1.442695
    %v1450 = vpow.pop %v1449
    %v1451 = vmul.f32 %v1421, 1.442695
    %v1452 = vpow.pop %v1451
    %v1453 = vmul.f32 %v1422, 1.442695
    %v1454 = vpow.pop %v1453
    %s1455 = scalar_lea.vmem [#allocation3], 128
    %v1456 = vld [vmem:[%s1455] sm:$0xff]
    %v1457 = vld [vmem:[%s1455 + $0x8] sm:$0xff]
    %v1458 = vld [vmem:[%s1455 + $0x10] sm:$0xff]
    %v1459 = vld [vmem:[%s1455 + $0x18] sm:$0xff]
    %v1460 = vld [vmem:[%s1455 + $0x20] sm:$0xff]
    %v1461 = vld [vmem:[%s1455 + $0x28] sm:$0xff]
    %v1462 = vld [vmem:[%s1455 + $0x30] sm:$0xff]
    %v1463 = vld [vmem:[%s1455 + $0x38] sm:$0xff]
    %v1464 = vld [vmem:[%s1455 + $0x40] sm:$0xff]
    %v1465 = vld [vmem:[%s1455 + $0x48] sm:$0xff]
    %v1466 = vld [vmem:[%s1455 + $0x50] sm:$0xff]
    %v1467 = vld [vmem:[%s1455 + $0x58] sm:$0xff]
    %v1468 = vld [vmem:[%s1455 + $0x60] sm:$0xff]
    %v1469 = vld [vmem:[%s1455 + $0x68] sm:$0xff]
    %v1470 = vld [vmem:[%s1455 + $0x70] sm:$0xff]
    %v1471 = vld [vmem:[%s1455 + $0x78] sm:$0xff]
    %v1472 = vmul.f32 %v1296, %v1456
    %v1473 = vmul.f32 %v1298, %v1457
    %v1474 = vmul.f32 %v1300, %v1458
    %v1475 = vmul.f32 %v1302, %v1459
    %v1476 = vmul.f32 %v1304, %v1460
    %v1477 = vmul.f32 %v1306, %v1461
    %v1478 = vmul.f32 %v1308, %v1462
    %v1479 = vmul.f32 %v1310, %v1463
    %v1480 = vmul.f32 %v1312, %v1464
    %v1481 = vmul.f32 %v1314, %v1465
    %v1482 = vmul.f32 %v1316, %v1466
    %v1483 = vmul.f32 %v1318, %v1467
    %v1484 = vmul.f32 %v1320, %v1468
    %v1485 = vmul.f32 %v1322, %v1469
    %v1486 = vmul.f32 %v1324, %v1470
    %v1487 = vmul.f32 %v1326, %v1471
    %1488 = vadd.xlane.f32.xlu0 %v1424
    %v1489 = vpop.xlane.xlu0 %1488
    %1490 = vadd.xlane.f32.xlu0 %v1426
    %v1491 = vpop.xlane.xlu0 %1490
    %1492 = vadd.xlane.f32.xlu0 %v1428
    %v1493 = vpop.xlane.xlu0 %1492
    %1494 = vadd.xlane.f32.xlu0 %v1430
    %v1495 = vpop.xlane.xlu0 %1494
    %1496 = vadd.xlane.f32.xlu0 %v1432
    %v1497 = vpop.xlane.xlu0 %1496
    %1498 = vadd.xlane.f32.xlu0 %v1434
    %v1499 = vpop.xlane.xlu0 %1498
    %1500 = vadd.xlane.f32.xlu0 %v1436
    %v1501 = vpop.xlane.xlu0 %1500
    %1502 = vadd.xlane.f32.xlu0 %v1438
    %v1503 = vpop.xlane.xlu0 %1502
    %1504 = vadd.xlane.f32.xlu0 %v1440
    %v1505 = vpop.xlane.xlu0 %1504
    %1506 = vadd.xlane.f32.xlu0 %v1442
    %v1507 = vpop.xlane.xlu0 %1506
    %1508 = vadd.xlane.f32.xlu0 %v1444
    %v1509 = vpop.xlane.xlu0 %1508
    %1510 = vadd.xlane.f32.xlu0 %v1446
    %v1511 = vpop.xlane.xlu0 %1510
    %1512 = vadd.xlane.f32.xlu0 %v1448
    %v1513 = vpop.xlane.xlu0 %1512
    %1514 = vadd.xlane.f32.xlu0 %v1450
    %v1515 = vpop.xlane.xlu0 %1514
    %1516 = vadd.xlane.f32.xlu0 %v1452
    %v1517 = vpop.xlane.xlu0 %1516
    %1518 = vadd.xlane.f32.xlu0 %v1454
    %v1519 = vpop.xlane.xlu0 %1518
    %v1520 = vadd.f32 %v1472, %v1489
    %v1521 = vadd.f32 %v1473, %v1491
    %v1522 = vadd.f32 %v1474, %v1493
    %v1523 = vadd.f32 %v1475, %v1495
    %v1524 = vadd.f32 %v1476, %v1497
    %v1525 = vadd.f32 %v1477, %v1499
    %v1526 = vadd.f32 %v1478, %v1501
    %v1527 = vadd.f32 %v1479, %v1503
    %v1528 = vadd.f32 %v1480, %v1505
    %v1529 = vadd.f32 %v1481, %v1507
    %v1530 = vadd.f32 %v1482, %v1509
    %v1531 = vadd.f32 %v1483, %v1511
    %v1532 = vadd.f32 %v1484, %v1513
    %v1533 = vadd.f32 %v1485, %v1515
    %v1534 = vadd.f32 %v1486, %v1517
    %v1535 = vadd.f32 %v1487, %v1519
    %1536 = vst.msk [vmem:[%s1455] sm:$0xff] %vm720, %v1520
    %1537 = vst.msk [vmem:[%s1455 + $0x8] sm:$0xff] %vm720, %v1521
    %1538 = vst.msk [vmem:[%s1455 + $0x10] sm:$0xff] %vm720, %v1522
    %1539 = vst.msk [vmem:[%s1455 + $0x18] sm:$0xff] %vm720, %v1523
    %1540 = vst.msk [vmem:[%s1455 + $0x20] sm:$0xff] %vm720, %v1524
    %1541 = vst.msk [vmem:[%s1455 + $0x28] sm:$0xff] %vm720, %v1525
    %1542 = vst.msk [vmem:[%s1455 + $0x30] sm:$0xff] %vm720, %v1526
    %1543 = vst.msk [vmem:[%s1455 + $0x38] sm:$0xff] %vm720, %v1527
    %1544 = vst.msk [vmem:[%s1455 + $0x40] sm:$0xff] %vm720, %v1528
    %1545 = vst.msk [vmem:[%s1455 + $0x48] sm:$0xff] %vm720, %v1529
    %1546 = vst.msk [vmem:[%s1455 + $0x50] sm:$0xff] %vm720, %v1530
    %1547 = vst.msk [vmem:[%s1455 + $0x58] sm:$0xff] %vm720, %v1531
    %1548 = vst.msk [vmem:[%s1455 + $0x60] sm:$0xff] %vm720, %v1532
    %1549 = vst.msk [vmem:[%s1455 + $0x68] sm:$0xff] %vm720, %v1533
    %1550 = vst.msk [vmem:[%s1455 + $0x70] sm:$0xff] %vm720, %v1534
    %1551 = vst.msk [vmem:[%s1455 + $0x78] sm:$0xff] %vm720, %v1535
    %s1552 = scalar_lea.vmem [#allocation4], 128
    %v1553 = vld [vmem:[%s1552] sm:$0xff]
    %v1554 = vld [vmem:[%s1552 + $0x8] sm:$0xff]
    %v1555 = vld [vmem:[%s1552 + $0x10] sm:$0xff]
    %v1556 = vld [vmem:[%s1552 + $0x18] sm:$0xff]
    %v1557 = vld [vmem:[%s1552 + $0x20] sm:$0xff]
    %v1558 = vld [vmem:[%s1552 + $0x28] sm:$0xff]
    %v1559 = vld [vmem:[%s1552 + $0x30] sm:$0xff]
    %v1560 = vld [vmem:[%s1552 + $0x38] sm:$0xff]
    %v1561 = vld [vmem:[%s1552 + $0x40] sm:$0xff]
    %v1562 = vld [vmem:[%s1552 + $0x48] sm:$0xff]
    %v1563 = vld [vmem:[%s1552 + $0x50] sm:$0xff]
    %v1564 = vld [vmem:[%s1552 + $0x58] sm:$0xff]
    %v1565 = vld [vmem:[%s1552 + $0x60] sm:$0xff]
    %v1566 = vld [vmem:[%s1552 + $0x68] sm:$0xff]
    %v1567 = vld [vmem:[%s1552 + $0x70] sm:$0xff]
    %v1568 = vld [vmem:[%s1552 + $0x78] sm:$0xff]
    %1570 = vset.pattern.permute.xlu0 0
    %1571 = vperm.xlu0 %1570, %v1296
    %v1572 = vpop.permute.xlu0 %1571
    %1575 = vset.pattern.permute.xlu0 0
    %1576 = vperm.xlu0 %1575, %v1298
    %v1577 = vpop.permute.xlu0 %1576
    %1580 = vset.pattern.permute.xlu0 0
    %1581 = vperm.xlu0 %1580, %v1300
    %v1582 = vpop.permute.xlu0 %1581
    %1585 = vset.pattern.permute.xlu0 0
    %1586 = vperm.xlu0 %1585, %v1302
    %v1587 = vpop.permute.xlu0 %1586
    %1590 = vset.pattern.permute.xlu0 0
    %1591 = vperm.xlu0 %1590, %v1304
    %v1592 = vpop.permute.xlu0 %1591
    %1595 = vset.pattern.permute.xlu0 0
    %1596 = vperm.xlu0 %1595, %v1306
    %v1597 = vpop.permute.xlu0 %1596
    %1600 = vset.pattern.permute.xlu0 0
    %1601 = vperm.xlu0 %1600, %v1308
    %v1602 = vpop.permute.xlu0 %1601
    %1605 = vset.pattern.permute.xlu0 0
    %1606 = vperm.xlu0 %1605, %v1310
    %v1607 = vpop.permute.xlu0 %1606
    %1610 = vset.pattern.permute.xlu0 0
    %1611 = vperm.xlu0 %1610, %v1312
    %v1612 = vpop.permute.xlu0 %1611
    %1615 = vset.pattern.permute.xlu0 0
    %1616 = vperm.xlu0 %1615, %v1314
    %v1617 = vpop.permute.xlu0 %1616
    %1620 = vset.pattern.permute.xlu0 0
    %1621 = vperm.xlu0 %1620, %v1316
    %v1622 = vpop.permute.xlu0 %1621
    %1625 = vset.pattern.permute.xlu0 0
    %1626 = vperm.xlu0 %1625, %v1318
    %v1627 = vpop.permute.xlu0 %1626
    %1630 = vset.pattern.permute.xlu0 0
    %1631 = vperm.xlu0 %1630, %v1320
    %v1632 = vpop.permute.xlu0 %1631
    %1635 = vset.pattern.permute.xlu0 0
    %1636 = vperm.xlu0 %1635, %v1322
    %v1637 = vpop.permute.xlu0 %1636
    %1640 = vset.pattern.permute.xlu0 0
    %1641 = vperm.xlu0 %1640, %v1324
    %v1642 = vpop.permute.xlu0 %1641
    %1645 = vset.pattern.permute.xlu0 0
    %1646 = vperm.xlu0 %1645, %v1326
    %v1647 = vpop.permute.xlu0 %1646
    %v1649 = vmul.f32 %v1572, %v1553
    %v1650 = vmul.f32 %v1577, %v1554
    %v1651 = vmul.f32 %v1582, %v1555
    %v1652 = vmul.f32 %v1587, %v1556
    %v1653 = vmul.f32 %v1592, %v1557
    %v1654 = vmul.f32 %v1597, %v1558
    %v1655 = vmul.f32 %v1602, %v1559
    %v1656 = vmul.f32 %v1607, %v1560
    %v1657 = vmul.f32 %v1612, %v1561
    %v1658 = vmul.f32 %v1617, %v1562
    %v1659 = vmul.f32 %v1622, %v1563
    %v1660 = vmul.f32 %v1627, %v1564
    %v1661 = vmul.f32 %v1632, %v1565
    %v1662 = vmul.f32 %v1637, %v1566
    %v1663 = vmul.f32 %v1642, %v1567
    %v1664 = vmul.f32 %v1647, %v1568
    %v1665 = vpack.c.bf16 %v1426, %v1424
    %v1666 = vpack.c.bf16 %v1430, %v1428
    %v1667 = vpack.c.bf16 %v1434, %v1432
    %v1668 = vpack.c.bf16 %v1438, %v1436
    %v1669 = vpack.c.bf16 %v1442, %v1440
    %v1670 = vpack.c.bf16 %v1446, %v1444
    %v1671 = vpack.c.bf16 %v1450, %v1448
    %v1672 = vpack.c.bf16 %v1454, %v1452
    %s1673 = scalar_lea.vmem %s3, 64
    %v1674 = vld [vmem:[%s1673] sm:$0xf]
    %v1675 = vld [vmem:[%s1673 + $0x4] sm:$0xf]
    %v1676 = vld [vmem:[%s1673 + $0x8] sm:$0xf]
    %v1677 = vld [vmem:[%s1673 + $0xc] sm:$0xf]
    %v1678 = vld [vmem:[%s1673 + $0x10] sm:$0xf]
    %v1679 = vld [vmem:[%s1673 + $0x14] sm:$0xf]
    %v1680 = vld [vmem:[%s1673 + $0x18] sm:$0xf]
    %v1681 = vld [vmem:[%s1673 + $0x1c] sm:$0xf]
    %v1682 = vld [vmem:[%s1673 + $0x20] sm:$0xf]
    %v1683 = vld [vmem:[%s1673 + $0x24] sm:$0xf]
    %v1684 = vld [vmem:[%s1673 + $0x28] sm:$0xf]
    %v1685 = vld [vmem:[%s1673 + $0x2c] sm:$0xf]
    %v1686 = vld [vmem:[%s1673 + $0x30] sm:$0xf]
    %v1687 = vld [vmem:[%s1673 + $0x34] sm:$0xf]
    %v1688 = vld [vmem:[%s1673 + $0x38] sm:$0xf]
    %v1689 = vld [vmem:[%s1673 + $0x3c] sm:$0xf]
    %v1706 = vunpack.c.l.b16 %v1674
    %v1707 = vunpack.c.l.b16 %v1675
    %v1708 = vunpack.c.l.b16 %v1676
    %v1709 = vunpack.c.l.b16 %v1677
    %v1710 = vunpack.c.l.b16 %v1678
    %v1711 = vunpack.c.l.b16 %v1679
    %v1712 = vunpack.c.l.b16 %v1680
    %v1713 = vunpack.c.l.b16 %v1681
    %v1714 = vunpack.c.l.b16 %v1682
    %v1715 = vunpack.c.l.b16 %v1683
    %v1716 = vunpack.c.l.b16 %v1684
    %v1717 = vunpack.c.l.b16 %v1685
    %v1718 = vunpack.c.l.b16 %v1686
    %v1719 = vunpack.c.l.b16 %v1687
    %v1720 = vunpack.c.l.b16 %v1688
    %v1721 = vunpack.c.l.b16 %v1689
    %v1722 = vpack.c.b16 %v1707, %v1706
    %v1723 = vpack.c.b16 %v1709, %v1708
    %v1724 = vpack.c.b16 %v1711, %v1710
    %v1725 = vpack.c.b16 %v1713, %v1712
    %v1726 = vpack.c.b16 %v1715, %v1714
    %v1727 = vpack.c.b16 %v1717, %v1716
    %v1728 = vpack.c.b16 %v1719, %v1718
    %v1729 = vpack.c.b16 %v1721, %v1720
    %1738 = vmatprep.subr.bf16.mxu0 0
    %1739 = vmatpush1.bf16.msra.mxu0 %v1729
    %1740 = vmatprep.subr.bf16.mxu0 0
    %1741 = vmatpush1.bf16.msra.mxu0 %v1728
    %1742 = vmatprep.subr.bf16.mxu0 0
    %1743 = vmatpush1.bf16.msra.mxu0 %v1727
    %1744 = vmatprep.subr.bf16.mxu0 0
    %1745 = vmatpush1.bf16.msra.mxu0 %v1726
    %1746 = vmatprep.subr.bf16.mxu0 0
    %1747 = vmatpush1.bf16.msra.mxu0 %v1725
    %1748 = vmatprep.subr.bf16.mxu0 0
    %1749 = vmatpush1.bf16.msra.mxu0 %v1724
    %1750 = vmatprep.subr.bf16.mxu0 0
    %1751 = vmatpush1.bf16.msra.mxu0 %v1723
    %1752 = vmatprep.subr.bf16.mxu0 0
    %1753 = vmatpush1.bf16.msra.mxu0 %v1722
    %1754 = vmatprep.subr.bf16.mxu0 0
    %1755 = vmatpush2.bf16.msra.mxu0 0
    %1756 = vmatprep.subr.bf16.mxu0 0
    %1757 = vmatpush2.bf16.msra.mxu0 0
    %1758 = vmatprep.subr.bf16.mxu0 0
    %1759 = vmatpush2.bf16.msra.mxu0 0
    %1760 = vmatprep.subr.bf16.mxu0 0
    %1761 = vmatpush2.bf16.msra.mxu0 0
    %1762 = vmatprep.subr.bf16.mxu0 0
    %1763 = vmatpush2.bf16.msra.mxu0 0
    %1764 = vmatprep.subr.bf16.mxu0 0
    %1765 = vmatpush2.bf16.msra.mxu0 0
    %1766 = vmatprep.subr.bf16.mxu0 0
    %1767 = vmatpush2.bf16.msra.mxu0 0
    %1768 = vmatprep.subr.bf16.mxu0 0
    %1769 = vmatpush2.bf16.msra.mxu0 0
    %1770 = vmatprep.mubr.bf16.mxu0 0
    %1771 = vmatmul.mubr.bf16.gmra.mxu0 %v1665
    %v1772 = vpop.f32.mrf.mxu0
    %v1773 = vadd.f32 0.0, %v1772
    %v1774 = vpop.f32.mrf.mxu0
    %v1775 = vpop.f32.mrf.mxu0
    %v1776 = vadd.f32 0.0, %v1775
    %v1777 = vpop.f32.mrf.mxu0
    %1778 = vmatprep.mubr.bf16.mxu0 0
    %1779 = vmatmul.mubr.bf16.gmra.mxu0 %v1666
    %v1780 = vpop.f32.mrf.mxu0
    %v1781 = vadd.f32 0.0, %v1780
    %v1782 = vpop.f32.mrf.mxu0
    %v1783 = vpop.f32.mrf.mxu0
    %v1784 = vadd.f32 0.0, %v1783
    %v1785 = vpop.f32.mrf.mxu0
    %1786 = vmatprep.mubr.bf16.mxu0 0
    %1787 = vmatmul.mubr.bf16.gmra.mxu0 %v1667
    %v1788 = vpop.f32.mrf.mxu0
    %v1789 = vadd.f32 0.0, %v1788
    %v1790 = vpop.f32.mrf.mxu0
    %v1791 = vpop.f32.mrf.mxu0
    %v1792 = vadd.f32 0.0, %v1791
    %v1793 = vpop.f32.mrf.mxu0
    %1794 = vmatprep.mubr.bf16.mxu0 0
    %1795 = vmatmul.mubr.bf16.gmra.mxu0 %v1668
    %v1796 = vpop.f32.mrf.mxu0
    %v1797 = vadd.f32 0.0, %v1796
    %v1798 = vpop.f32.mrf.mxu0
    %v1799 = vpop.f32.mrf.mxu0
    %v1800 = vadd.f32 0.0, %v1799
    %v1801 = vpop.f32.mrf.mxu0
    %1802 = vmatprep.mubr.bf16.mxu0 0
    %1803 = vmatmul.mubr.bf16.gmra.mxu0 %v1669
    %v1804 = vpop.f32.mrf.mxu0
    %v1805 = vadd.f32 0.0, %v1804
    %v1806 = vpop.f32.mrf.mxu0
    %v1807 = vpop.f32.mrf.mxu0
    %v1808 = vadd.f32 0.0, %v1807
    %v1809 = vpop.f32.mrf.mxu0
    %1810 = vmatprep.mubr.bf16.mxu0 0
    %1811 = vmatmul.mubr.bf16.gmra.mxu0 %v1670
    %v1812 = vpop.f32.mrf.mxu0
    %v1813 = vadd.f32 0.0, %v1812
    %v1814 = vpop.f32.mrf.mxu0
    %v1815 = vpop.f32.mrf.mxu0
    %v1816 = vadd.f32 0.0, %v1815
    %v1817 = vpop.f32.mrf.mxu0
    %1818 = vmatprep.mubr.bf16.mxu0 0
    %1819 = vmatmul.mubr.bf16.gmra.mxu0 %v1671
    %v1820 = vpop.f32.mrf.mxu0
    %v1821 = vadd.f32 0.0, %v1820
    %v1822 = vpop.f32.mrf.mxu0
    %v1823 = vpop.f32.mrf.mxu0
    %v1824 = vadd.f32 0.0, %v1823
    %v1825 = vpop.f32.mrf.mxu0
    %1826 = vmatprep.mubr.bf16.mxu0 0
    %1827 = vmatmul.mubr.bf16.gmra.mxu0 %v1672
    %v1828 = vpop.f32.mrf.mxu0
    %v1829 = vadd.f32 0.0, %v1828
    %v1830 = vpop.f32.mrf.mxu0
    %v1831 = vpop.f32.mrf.mxu0
    %v1832 = vadd.f32 0.0, %v1831
    %v1833 = vpop.f32.mrf.mxu0
    %1834 = vdwg.mxu0
    %v1835 = vadd.f32 %v1649, %v1773
    %v1836 = vadd.f32 %v1650, %v1776
    %v1837 = vadd.f32 %v1651, %v1781
    %v1838 = vadd.f32 %v1652, %v1784
    %v1839 = vadd.f32 %v1653, %v1789
    %v1840 = vadd.f32 %v1654, %v1792
    %v1841 = vadd.f32 %v1655, %v1797
    %v1842 = vadd.f32 %v1656, %v1800
    %v1843 = vadd.f32 %v1657, %v1805
    %v1844 = vadd.f32 %v1658, %v1808
    %v1845 = vadd.f32 %v1659, %v1813
    %v1846 = vadd.f32 %v1660, %v1816
    %v1847 = vadd.f32 %v1661, %v1821
    %v1848 = vadd.f32 %v1662, %v1824
    %v1849 = vadd.f32 %v1663, %v1829
    %v1850 = vadd.f32 %v1664, %v1832
    %1851 = vst [vmem:[%s1552] sm:$0xff] %v1835
    %1852 = vst [vmem:[%s1552 + $0x8] sm:$0xff] %v1836
    %1853 = vst [vmem:[%s1552 + $0x10] sm:$0xff] %v1837
    %1854 = vst [vmem:[%s1552 + $0x18] sm:$0xff] %v1838
    %1855 = vst [vmem:[%s1552 + $0x20] sm:$0xff] %v1839
    %1856 = vst [vmem:[%s1552 + $0x28] sm:$0xff] %v1840
    %1857 = vst [vmem:[%s1552 + $0x30] sm:$0xff] %v1841
    %1858 = vst [vmem:[%s1552 + $0x38] sm:$0xff] %v1842
    %1859 = vst [vmem:[%s1552 + $0x40] sm:$0xff] %v1843
    %1860 = vst [vmem:[%s1552 + $0x48] sm:$0xff] %v1844
    %1861 = vst [vmem:[%s1552 + $0x50] sm:$0xff] %v1845
    %1862 = vst [vmem:[%s1552 + $0x58] sm:$0xff] %v1846
    %1863 = vst [vmem:[%s1552 + $0x60] sm:$0xff] %v1847
    %1864 = vst [vmem:[%s1552 + $0x68] sm:$0xff] %v1848
    %1865 = vst [vmem:[%s1552 + $0x70] sm:$0xff] %v1849
    %1866 = vst [vmem:[%s1552 + $0x78] sm:$0xff] %v1850
    %1867 = vst.msk [vmem:[%s1214] sm:$0xff] %vm720, %v1263
    %1868 = vst.msk [vmem:[%s1214 + $0x8] sm:$0xff] %vm720, %v1264
    %1869 = vst.msk [vmem:[%s1214 + $0x10] sm:$0xff] %vm720, %v1265
    %1870 = vst.msk [vmem:[%s1214 + $0x18] sm:$0xff] %vm720, %v1266
    %1871 = vst.msk [vmem:[%s1214 + $0x20] sm:$0xff] %vm720, %v1267
    %1872 = vst.msk [vmem:[%s1214 + $0x28] sm:$0xff] %vm720, %v1268
    %1873 = vst.msk [vmem:[%s1214 + $0x30] sm:$0xff] %vm720, %v1269
    %1874 = vst.msk [vmem:[%s1214 + $0x38] sm:$0xff] %vm720, %v1270
    %1875 = vst.msk [vmem:[%s1214 + $0x40] sm:$0xff] %vm720, %v1271
    %1876 = vst.msk [vmem:[%s1214 + $0x48] sm:$0xff] %vm720, %v1272
    %1877 = vst.msk [vmem:[%s1214 + $0x50] sm:$0xff] %vm720, %v1273
    %1878 = vst.msk [vmem:[%s1214 + $0x58] sm:$0xff] %vm720, %v1274
    %1879 = vst.msk [vmem:[%s1214 + $0x60] sm:$0xff] %vm720, %v1275
    %1880 = vst.msk [vmem:[%s1214 + $0x68] sm:$0xff] %vm720, %v1276
    %1881 = vst.msk [vmem:[%s1214 + $0x70] sm:$0xff] %vm720, %v1277
    %1882 = vst.msk [vmem:[%s1214 + $0x78] sm:$0xff] %vm720, %v1278
    // Predicated region
    $region30: #{tpu_custom_call.1} parent=1 // pred_check
      %p1883 = pneg %p38
    $region31: #{tpu_custom_call.1} parent=1 // pred_check_branch
      %1885 = sbr.rel (%p1883) target = $region33
    $region32: #{tpu_custom_call.1} parent=1 // pred_region
      %v1886 = vld [vmem:[#allocation4] sm:$0xff]
      %v1887 = vld [vmem:[#allocation4 + $0x8] sm:$0xff]
      %v1888 = vld [vmem:[#allocation4 + $0x10] sm:$0xff]
      %v1889 = vld [vmem:[#allocation4 + $0x18] sm:$0xff]
      %v1890 = vld [vmem:[#allocation4 + $0x20] sm:$0xff]
      %v1891 = vld [vmem:[#allocation4 + $0x28] sm:$0xff]
      %v1892 = vld [vmem:[#allocation4 + $0x30] sm:$0xff]
      %v1893 = vld [vmem:[#allocation4 + $0x38] sm:$0xff]
      %v1894 = vld [vmem:[#allocation4 + $0x40] sm:$0xff]
      %v1895 = vld [vmem:[#allocation4 + $0x48] sm:$0xff]
      %v1896 = vld [vmem:[#allocation4 + $0x50] sm:$0xff]
      %v1897 = vld [vmem:[#allocation4 + $0x58] sm:$0xff]
      %v1898 = vld [vmem:[#allocation4 + $0x60] sm:$0xff]
      %v1899 = vld [vmem:[#allocation4 + $0x68] sm:$0xff]
      %v1900 = vld [vmem:[#allocation4 + $0x70] sm:$0xff]
      %v1901 = vld [vmem:[#allocation4 + $0x78] sm:$0xff]
      %v1902 = vld [vmem:[#allocation3] sm:$0xff]
      %v1903 = vld [vmem:[#allocation3 + $0x8] sm:$0xff]
      %v1904 = vld [vmem:[#allocation3 + $0x10] sm:$0xff]
      %v1905 = vld [vmem:[#allocation3 + $0x18] sm:$0xff]
      %v1906 = vld [vmem:[#allocation3 + $0x20] sm:$0xff]
      %v1907 = vld [vmem:[#allocation3 + $0x28] sm:$0xff]
      %v1908 = vld [vmem:[#allocation3 + $0x30] sm:$0xff]
      %v1909 = vld [vmem:[#allocation3 + $0x38] sm:$0xff]
      %v1910 = vld [vmem:[#allocation3 + $0x40] sm:$0xff]
      %v1911 = vld [vmem:[#allocation3 + $0x48] sm:$0xff]
      %v1912 = vld [vmem:[#allocation3 + $0x50] sm:$0xff]
      %v1913 = vld [vmem:[#allocation3 + $0x58] sm:$0xff]
      %v1914 = vld [vmem:[#allocation3 + $0x60] sm:$0xff]
      %v1915 = vld [vmem:[#allocation3 + $0x68] sm:$0xff]
      %v1916 = vld [vmem:[#allocation3 + $0x70] sm:$0xff]
      %v1917 = vld [vmem:[#allocation3 + $0x78] sm:$0xff]
      %v1918 = vrcp.pop %v1902
      %v1919 = vrcp.pop %v1903
      %v1920 = vrcp.pop %v1904
      %v1921 = vrcp.pop %v1905
      %v1922 = vrcp.pop %v1906
      %v1923 = vrcp.pop %v1907
      %v1924 = vrcp.pop %v1908
      %v1925 = vrcp.pop %v1909
      %v1926 = vrcp.pop %v1910
      %v1927 = vrcp.pop %v1911
      %v1928 = vrcp.pop %v1912
      %v1929 = vrcp.pop %v1913
      %v1930 = vrcp.pop %v1914
      %v1931 = vrcp.pop %v1915
      %v1932 = vrcp.pop %v1916
      %v1933 = vrcp.pop %v1917
      %1935 = vset.pattern.permute.xlu0 0
      %1936 = vperm.xlu0 %1935, %v1918
      %v1937 = vpop.permute.xlu0 %1936
      %1940 = vset.pattern.permute.xlu0 0
      %1941 = vperm.xlu0 %1940, %v1919
      %v1942 = vpop.permute.xlu0 %1941
      %1945 = vset.pattern.permute.xlu0 0
      %1946 = vperm.xlu0 %1945, %v1920
      %v1947 = vpop.permute.xlu0 %1946
      %1950 = vset.pattern.permute.xlu0 0
      %1951 = vperm.xlu0 %1950, %v1921
      %v1952 = vpop.permute.xlu0 %1951
      %1955 = vset.pattern.permute.xlu0 0
      %1956 = vperm.xlu0 %1955, %v1922
      %v1957 = vpop.permute.xlu0 %1956
      %1960 = vset.pattern.permute.xlu0 0
      %1961 = vperm.xlu0 %1960, %v1923
      %v1962 = vpop.permute.xlu0 %1961
      %1965 = vset.pattern.permute.xlu0 0
      %1966 = vperm.xlu0 %1965, %v1924
      %v1967 = vpop.permute.xlu0 %1966
      %1970 = vset.pattern.permute.xlu0 0
      %1971 = vperm.xlu0 %1970, %v1925
      %v1972 = vpop.permute.xlu0 %1971
      %1975 = vset.pattern.permute.xlu0 0
      %1976 = vperm.xlu0 %1975, %v1926
      %v1977 = vpop.permute.xlu0 %1976
      %1980 = vset.pattern.permute.xlu0 0
      %1981 = vperm.xlu0 %1980, %v1927
      %v1982 = vpop.permute.xlu0 %1981
      %1985 = vset.pattern.permute.xlu0 0
      %1986 = vperm.xlu0 %1985, %v1928
      %v1987 = vpop.permute.xlu0 %1986
      %1990 = vset.pattern.permute.xlu0 0
      %1991 = vperm.xlu0 %1990, %v1929
      %v1992 = vpop.permute.xlu0 %1991
      %1995 = vset.pattern.permute.xlu0 0
      %1996 = vperm.xlu0 %1995, %v1930
      %v1997 = vpop.permute.xlu0 %1996
      %2000 = vset.pattern.permute.xlu0 0
      %2001 = vperm.xlu0 %2000, %v1931
      %v2002 = vpop.permute.xlu0 %2001
      %2005 = vset.pattern.permute.xlu0 0
      %2006 = vperm.xlu0 %2005, %v1932
      %v2007 = vpop.permute.xlu0 %2006
      %2010 = vset.pattern.permute.xlu0 0
      %2011 = vperm.xlu0 %2010, %v1933
      %v2012 = vpop.permute.xlu0 %2011
      %v2014 = vmul.f32 %v1886, %v1937
      %v2015 = vmul.f32 %v1887, %v1942
      %v2016 = vmul.f32 %v1888, %v1947
      %v2017 = vmul.f32 %v1889, %v1952
      %v2018 = vmul.f32 %v1890, %v1957
      %v2019 = vmul.f32 %v1891, %v1962
      %v2020 = vmul.f32 %v1892, %v1967
      %v2021 = vmul.f32 %v1893, %v1972
      %v2022 = vmul.f32 %v1894, %v1977
      %v2023 = vmul.f32 %v1895, %v1982
      %v2024 = vmul.f32 %v1896, %v1987
      %v2025 = vmul.f32 %v1897, %v1992
      %v2026 = vmul.f32 %v1898, %v1997
      %v2027 = vmul.f32 %v1899, %v2002
      %v2028 = vmul.f32 %v1900, %v2007
      %v2029 = vmul.f32 %v1901, %v2012
      %v2030 = vld [vmem:[%s1552] sm:$0xff]
      %v2031 = vld [vmem:[%s1552 + $0x8] sm:$0xff]
      %v2032 = vld [vmem:[%s1552 + $0x10] sm:$0xff]
      %v2033 = vld [vmem:[%s1552 + $0x18] sm:$0xff]
      %v2034 = vld [vmem:[%s1552 + $0x20] sm:$0xff]
      %v2035 = vld [vmem:[%s1552 + $0x28] sm:$0xff]
      %v2036 = vld [vmem:[%s1552 + $0x30] sm:$0xff]
      %v2037 = vld [vmem:[%s1552 + $0x38] sm:$0xff]
      %v2038 = vld [vmem:[%s1552 + $0x40] sm:$0xff]
      %v2039 = vld [vmem:[%s1552 + $0x48] sm:$0xff]
      %v2040 = vld [vmem:[%s1552 + $0x50] sm:$0xff]
      %v2041 = vld [vmem:[%s1552 + $0x58] sm:$0xff]
      %v2042 = vld [vmem:[%s1552 + $0x60] sm:$0xff]
      %v2043 = vld [vmem:[%s1552 + $0x68] sm:$0xff]
      %v2044 = vld [vmem:[%s1552 + $0x70] sm:$0xff]
      %v2045 = vld [vmem:[%s1552 + $0x78] sm:$0xff]
      %v2046 = vld [vmem:[%s1455] sm:$0xff]
      %v2047 = vld [vmem:[%s1455 + $0x8] sm:$0xff]
      %v2048 = vld [vmem:[%s1455 + $0x10] sm:$0xff]
      %v2049 = vld [vmem:[%s1455 + $0x18] sm:$0xff]
      %v2050 = vld [vmem:[%s1455 + $0x20] sm:$0xff]
      %v2051 = vld [vmem:[%s1455 + $0x28] sm:$0xff]
      %v2052 = vld [vmem:[%s1455 + $0x30] sm:$0xff]
      %v2053 = vld [vmem:[%s1455 + $0x38] sm:$0xff]
      %v2054 = vld [vmem:[%s1455 + $0x40] sm:$0xff]
      %v2055 = vld [vmem:[%s1455 + $0x48] sm:$0xff]
      %v2056 = vld [vmem:[%s1455 + $0x50] sm:$0xff]
      %v2057 = vld [vmem:[%s1455 + $0x58] sm:$0xff]
      %v2058 = vld [vmem:[%s1455 + $0x60] sm:$0xff]
      %v2059 = vld [vmem:[%s1455 + $0x68] sm:$0xff]
      %v2060 = vld [vmem:[%s1455 + $0x70] sm:$0xff]
      %v2061 = vld [vmem:[%s1455 + $0x78] sm:$0xff]
      %v2062 = vrcp.pop %v2046
      %v2063 = vrcp.pop %v2047
      %v2064 = vrcp.pop %v2048
      %v2065 = vrcp.pop %v2049
      %v2066 = vrcp.pop %v2050
      %v2067 = vrcp.pop %v2051
      %v2068 = vrcp.pop %v2052
      %v2069 = vrcp.pop %v2053
      %v2070 = vrcp.pop %v2054
      %v2071 = vrcp.pop %v2055
      %v2072 = vrcp.pop %v2056
      %v2073 = vrcp.pop %v2057
      %v2074 = vrcp.pop %v2058
      %v2075 = vrcp.pop %v2059
      %v2076 = vrcp.pop %v2060
      %v2077 = vrcp.pop %v2061
      %2079 = vset.pattern.permute.xlu0 0
      %2080 = vperm.xlu0 %2079, %v2062
      %v2081 = vpop.permute.xlu0 %2080
      %2084 = vset.pattern.permute.xlu0 0
      %2085 = vperm.xlu0 %2084, %v2063
      %v2086 = vpop.permute.xlu0 %2085
      %2089 = vset.pattern.permute.xlu0 0
      %2090 = vperm.xlu0 %2089, %v2064
      %v2091 = vpop.permute.xlu0 %2090
      %2094 = vset.pattern.permute.xlu0 0
      %2095 = vperm.xlu0 %2094, %v2065
      %v2096 = vpop.permute.xlu0 %2095
      %2099 = vset.pattern.permute.xlu0 0
      %2100 = vperm.xlu0 %2099, %v2066
      %v2101 = vpop.permute.xlu0 %2100
      %2104 = vset.pattern.permute.xlu0 0
      %2105 = vperm.xlu0 %2104, %v2067
      %v2106 = vpop.permute.xlu0 %2105
      %2109 = vset.pattern.permute.xlu0 0
      %2110 = vperm.xlu0 %2109, %v2068
      %v2111 = vpop.permute.xlu0 %2110
      %2114 = vset.pattern.permute.xlu0 0
      %2115 = vperm.xlu0 %2114, %v2069
      %v2116 = vpop.permute.xlu0 %2115
      %2119 = vset.pattern.permute.xlu0 0
      %2120 = vperm.xlu0 %2119, %v2070
      %v2121 = vpop.permute.xlu0 %2120
      %2124 = vset.pattern.permute.xlu0 0
      %2125 = vperm.xlu0 %2124, %v2071
      %v2126 = vpop.permute.xlu0 %2125
      %2129 = vset.pattern.permute.xlu0 0
      %2130 = vperm.xlu0 %2129, %v2072
      %v2131 = vpop.permute.xlu0 %2130
      %2134 = vset.pattern.permute.xlu0 0
      %2135 = vperm.xlu0 %2134, %v2073
      %v2136 = vpop.permute.xlu0 %2135
      %2139 = vset.pattern.permute.xlu0 0
      %2140 = vperm.xlu0 %2139, %v2074
      %v2141 = vpop.permute.xlu0 %2140
      %2144 = vset.pattern.permute.xlu0 0
      %2145 = vperm.xlu0 %2144, %v2075
      %v2146 = vpop.permute.xlu0 %2145
      %2149 = vset.pattern.permute.xlu0 0
      %2150 = vperm.xlu0 %2149, %v2076
      %v2151 = vpop.permute.xlu0 %2150
      %2154 = vset.pattern.permute.xlu0 0
      %2155 = vperm.xlu0 %2154, %v2077
      %v2156 = vpop.permute.xlu0 %2155
      %v2158 = vmul.f32 %v2030, %v2081
      %v2159 = vmul.f32 %v2031, %v2086
      %v2160 = vmul.f32 %v2032, %v2091
      %v2161 = vmul.f32 %v2033, %v2096
      %v2162 = vmul.f32 %v2034, %v2101
      %v2163 = vmul.f32 %v2035, %v2106
      %v2164 = vmul.f32 %v2036, %v2111
      %v2165 = vmul.f32 %v2037, %v2116
      %v2166 = vmul.f32 %v2038, %v2121
      %v2167 = vmul.f32 %v2039, %v2126
      %v2168 = vmul.f32 %v2040, %v2131
      %v2169 = vmul.f32 %v2041, %v2136
      %v2170 = vmul.f32 %v2042, %v2141
      %v2171 = vmul.f32 %v2043, %v2146
      %v2172 = vmul.f32 %v2044, %v2151
      %v2173 = vmul.f32 %v2045, %v2156
      %v2174 = vadd.f32 %v2014, %v2158
      %v2175 = vadd.f32 %v2015, %v2159
      %v2176 = vadd.f32 %v2016, %v2160
      %v2177 = vadd.f32 %v2017, %v2161
      %v2178 = vadd.f32 %v2018, %v2162
      %v2179 = vadd.f32 %v2019, %v2163
      %v2180 = vadd.f32 %v2020, %v2164
      %v2181 = vadd.f32 %v2021, %v2165
      %v2182 = vadd.f32 %v2022, %v2166
      %v2183 = vadd.f32 %v2023, %v2167
      %v2184 = vadd.f32 %v2024, %v2168
      %v2185 = vadd.f32 %v2025, %v2169
      %v2186 = vadd.f32 %v2026, %v2170
      %v2187 = vadd.f32 %v2027, %v2171
      %v2188 = vadd.f32 %v2028, %v2172
      %v2189 = vadd.f32 %v2029, %v2173
      %v2190 = vmul.f32 %v2174, 0.5
      %v2191 = vmul.f32 %v2175, 0.5
      %v2192 = vmul.f32 %v2176, 0.5
      %v2193 = vmul.f32 %v2177, 0.5
      %v2194 = vmul.f32 %v2178, 0.5
      %v2195 = vmul.f32 %v2179, 0.5
      %v2196 = vmul.f32 %v2180, 0.5
      %v2197 = vmul.f32 %v2181, 0.5
      %v2198 = vmul.f32 %v2182, 0.5
      %v2199 = vmul.f32 %v2183, 0.5
      %v2200 = vmul.f32 %v2184, 0.5
      %v2201 = vmul.f32 %v2185, 0.5
      %v2202 = vmul.f32 %v2186, 0.5
      %v2203 = vmul.f32 %v2187, 0.5
      %v2204 = vmul.f32 %v2188, 0.5
      %v2205 = vmul.f32 %v2189, 0.5
      %v2206 = vld [vmem:[%s4] sm:$0x1]
      %v2208 = vlaneseq
      %v2209 = vshrl.u32 %v2208, 7
      %v2210 = vsub.s32 0, %v2209
      %v2211 = vrot.slane %v2206, %v2210
      %v2213 = vadd.f32 %v2190, %v2211
      %v2214 = vadd.f32 %v2191, %v2211
      %v2215 = vadd.f32 %v2192, %v2211
      %v2216 = vadd.f32 %v2193, %v2211
      %v2217 = vadd.f32 %v2194, %v2211
      %v2218 = vadd.f32 %v2195, %v2211
      %v2219 = vadd.f32 %v2196, %v2211
      %v2220 = vadd.f32 %v2197, %v2211
      %v2221 = vadd.f32 %v2198, %v2211
      %v2222 = vadd.f32 %v2199, %v2211
      %v2223 = vadd.f32 %v2200, %v2211
      %v2224 = vadd.f32 %v2201, %v2211
      %v2225 = vadd.f32 %v2202, %v2211
      %v2226 = vadd.f32 %v2203, %v2211
      %v2227 = vadd.f32 %v2204, %v2211
      %v2228 = vadd.f32 %v2205, %v2211
      %v2229 = vmax.f32 %v2213, 0.0
      %v2230 = vmax.f32 %v2214, 0.0
      %v2231 = vmax.f32 %v2215, 0.0
      %v2232 = vmax.f32 %v2216, 0.0
      %v2233 = vmax.f32 %v2217, 0.0
      %v2234 = vmax.f32 %v2218, 0.0
      %v2235 = vmax.f32 %v2219, 0.0
      %v2236 = vmax.f32 %v2220, 0.0
      %v2237 = vmax.f32 %v2221, 0.0
      %v2238 = vmax.f32 %v2222, 0.0
      %v2239 = vmax.f32 %v2223, 0.0
      %v2240 = vmax.f32 %v2224, 0.0
      %v2241 = vmax.f32 %v2225, 0.0
      %v2242 = vmax.f32 %v2226, 0.0
      %v2243 = vmax.f32 %v2227, 0.0
      %v2244 = vmax.f32 %v2228, 0.0
      %2245 = vst [vmem:[#allocation8] sm:$0xff] %v2229
      %2246 = vst [vmem:[#allocation8 + $0x8] sm:$0xff] %v2230
      %2247 = vst [vmem:[#allocation8 + $0x10] sm:$0xff] %v2231
      %2248 = vst [vmem:[#allocation8 + $0x18] sm:$0xff] %v2232
      %2249 = vst [vmem:[#allocation8 + $0x20] sm:$0xff] %v2233
      %2250 = vst [vmem:[#allocation8 + $0x28] sm:$0xff] %v2234
      %2251 = vst [vmem:[#allocation8 + $0x30] sm:$0xff] %v2235
      %2252 = vst [vmem:[#allocation8 + $0x38] sm:$0xff] %v2236
      %2253 = vst [vmem:[#allocation8 + $0x40] sm:$0xff] %v2237
      %2254 = vst [vmem:[#allocation8 + $0x48] sm:$0xff] %v2238
      %2255 = vst [vmem:[#allocation8 + $0x50] sm:$0xff] %v2239
      %2256 = vst [vmem:[#allocation8 + $0x58] sm:$0xff] %v2240
      %2257 = vst [vmem:[#allocation8 + $0x60] sm:$0xff] %v2241
      %2258 = vst [vmem:[#allocation8 + $0x68] sm:$0xff] %v2242
      %2259 = vst [vmem:[#allocation8 + $0x70] sm:$0xff] %v2243
      %2260 = vst [vmem:[#allocation8 + $0x78] sm:$0xff] %v2244
    $region33: #{tpu_custom_call.1} parent=1 // pred_fallthru
      _
    // Predicated region
    $region34: #{tpu_custom_call.1} parent=1 // pred_check
      _
    $region35: #{tpu_custom_call.1} parent=1 // pred_check_branch
      %2262 = sbr.rel (0) target = $region37
    $region36: #{tpu_custom_call.1} parent=1 // pred_region
      %s2264 = ssub.s32 2048, 2048
      %2265 = vsyncadd [#allocation7], %s2264
      %s2266 = sshll.u32 [#allocation8], 4
      %s2267 = int_to_ptr.vmem [resolvable:$true] %s2266
      %2272 = dma.vmem_to_hbm [thread:$0]  %s2267, 2048, %s5, [#allocation7], 128, 128, 8
    $region37: #{tpu_custom_call.1} parent=1 // pred_fallthru
      _
    // Predicated region
    $region38: #{tpu_custom_call.1} parent=1 // pred_check
      _
    $region39: #{tpu_custom_call.1} parent=1 // pred_check_branch
      %2274 = sbr.rel (0) target = $region41
    $region40: #{tpu_custom_call.1} parent=1 // pred_region
      %2275 = dma.done [#allocation7], 2048
    $region41: #{tpu_custom_call.1} parent=1 // pred_fallthru
      _
    %2276 = vsyncpa [#allocation6], 1
    %2277 = vsyncpa [#allocation7], 1

</llo_original>
